<compile_context>
chip_gen: v7x
topology: tpu7x:2x2x1
jax: 0.10.0
libtpu: 0.0.40
codegen_flags: <defaults>
</compile_context>

<pallas_src>
import math

import jax
import jax.numpy as jnp
from jax.experimental import pallas as pl
from jax.experimental.pallas import tpu as pltpu


def _bc_attn_kernel(x_ref, gamma_ref, beta_ref, w1_ref, b1_ref, w2_ref,
                    b2_ref, out_ref):
    # Block: (NB, C, HW).  Spatial (H*W) on lanes (dense), channels on
    # sublanes, NB images stacked on the outermost dim.
    x = x_ref[...]                                  # (NB, C, HW) native dtype
    xf = x.astype(jnp.float32)                      # streamed upcast for stats
    NB, C, HW = xf.shape

    # ---- LayerNorm statistics over the channel (sublane) axis, per spatial
    # location.  Centered two-pass variance; XLU reductions (f32, exact).
    mu = jnp.sum(xf, axis=1, keepdims=True) * (1.0 / C)        # (NB, 1, HW)
    d = xf - mu                                                 # (NB, C, HW)
    var = jnp.sum(d * d, axis=1, keepdims=True) * (1.0 / C)     # (NB, 1, HW)
    r = jax.lax.rsqrt(var + 1e-5)                               # (NB, 1, HW)

    # ---- Spatial mean of the *normalized* activations in factored form:
    # mean_hw((x - mu) * r) * gamma + beta; the normalized slab is never
    # materialised and the affine is folded in after the spatial mean.
    xr = jnp.sum(d * r, axis=2)                                 # (NB, C)
    xg = xr * (1.0 / HW) * gamma_ref[...] + beta_ref[...]       # (NB, C)

    # ---- Tiny squeeze/excite MLP (C -> rC -> C); precision pinned.
    hp = jax.lax.Precision.HIGHEST
    h = jnp.dot(xg, w1_ref[...], precision=hp,
                preferred_element_type=jnp.float32) + b1_ref[...]      # (NB, rC)
    h = 0.5 * h * (1.0 + jax.lax.erf(h * (1.0 / math.sqrt(2.0))))      # exact GELU
    a = jnp.dot(h, w2_ref[...], precision=hp,
                preferred_element_type=jnp.float32) + b2_ref[...]      # (NB, C)
    a = jax.nn.sigmoid(a)

    # ---- Gate the ORIGINAL (un-normalized) input in its native dtype;
    # (NB, C, 1) broadcasts over the lane (spatial) axis.
    out_ref[...] = (x * a.astype(x.dtype)[:, :, None]).astype(out_ref.dtype)


def _pick_batch_block(N, per_image_bytes, *, target_bytes=2 << 20, min_steps=8):
    """Images per grid step: ~MiB-scale blocks, >=min_steps steps when N allows,
    and a divisor of N (no ragged trailing block)."""
    nb = int(max(1, min(N, target_bytes // max(per_image_bytes, 1))))
    if N >= min_steps:
        nb = max(1, min(nb, N // min_steps))
    while N % nb:
        nb -= 1
    return nb


def _bc_attn_xla(x_nchw, params):
    """Fused XLA fallback (misaligned C / oversized per-image slab)."""
    gamma, beta, w1, b1, w2, b2 = params
    N, C, H, W = x_nchw.shape
    x = x_nchw.reshape(N, C, H * W)
    xf = x.astype(jnp.float32)
    mu = jnp.mean(xf, axis=1, keepdims=True)
    d = xf - mu
    var = jnp.mean(d * d, axis=1, keepdims=True)
    xg = jnp.mean(d * jax.lax.rsqrt(var + 1e-5), axis=2)          # (N, C)
    xg = xg * gamma.reshape(1, C) + beta.reshape(1, C)
    hp = jax.lax.Precision.HIGHEST
    h = jnp.dot(xg, w1, precision=hp) + b1.reshape(1, -1)
    h = 0.5 * h * (1.0 + jax.lax.erf(h * (1.0 / math.sqrt(2.0))))
    a = jax.nn.sigmoid(jnp.dot(h, w2, precision=hp) + b2.reshape(1, C))
    out = x * a[:, :, None].astype(x.dtype)
    return out.reshape(N, C, H, W)


def bc_attn_pallas(x_nchw, params, *, donate_input=False):
    """BcAttn forward.  x_nchw: (N, C, H, W).  Returns (N, C, H, W)."""
    gamma, beta, w1, b1, w2, b2 = params
    N, C, H, W = x_nchw.shape
    HW = H * W
    rC = w1.shape[1]

    itemsize = jnp.dtype(x_nchw.dtype).itemsize
    per_image_bytes = C * HW * itemsize

    # Generation-aware VMEM budget (128 MiB on v5e/v6e, 64 MiB on v7x).
    try:
        vmem_cap = int(pltpu.get_tpu_info().vmem_capacity_bytes)
    except Exception:
        vmem_cap = 64 << 20
    vmem_budget = int(0.75 * vmem_cap)

    # Misaligned channels or a per-image slab that can't fit the
    # single-block-per-image schedule -> fused XLA fallback.
    # TODO(synk): spatially-tiled two-pass Pallas path for huge C*HW slabs.
    single_image_est = 4 * per_image_bytes + 3 * C * HW * 4 + (2 << 20)
    if (C % 8) or (HW % 128) or (single_image_est > vmem_budget):
        return _bc_attn_xla(x_nchw, params)

    nb = _pick_batch_block(N, per_image_bytes)

    # NCHW -> (N, C, H*W): pure reshape, no HBM transpose anywhere.
    x = x_nchw.reshape(N, C, HW)

    # Tiny one-time parameter re-layouts so the kernel never transposes.
    gamma_r = gamma.reshape(1, C).astype(jnp.float32)
    beta_r = beta.reshape(1, C).astype(jnp.float32)
    w1_f = w1.astype(jnp.float32)                    # (C, rC)
    b1_r = b1.reshape(1, rC).astype(jnp.float32)
    w2_f = w2.astype(jnp.float32)                    # (rC, C)
    b2_r = b2.reshape(1, C).astype(jnp.float32)

    # VMEM: 2x double-buffered in+out blocks (input dtype) + ~3 f32 slab-sized
    # temporaries + params + slack, clamped to the device budget.
    block_bytes = nb * per_image_bytes
    block_f32_bytes = nb * C * HW * 4
    param_bytes = (3 * C + 2 * rC + 2 * C * rC) * 4
    est = 4 * block_bytes + 3 * block_f32_bytes + 4 * param_bytes + (2 << 20)
    vmem_limit = int(min(vmem_budget, max(16 << 20, est)))

    out = pl.pallas_call(
        _bc_attn_kernel,
        out_shape=jax.ShapeDtypeStruct((N, C, HW), x.dtype),
        grid_spec=pl.GridSpec(
            grid=(N // nb,),
            in_specs=[
                pl.BlockSpec((nb, C, HW), lambda i: (i, 0, 0)),   # x
                pl.BlockSpec((1, C), lambda i: (0, 0)),           # gamma (row)
                pl.BlockSpec((1, C), lambda i: (0, 0)),           # beta  (row)
                pl.BlockSpec((C, rC), lambda i: (0, 0)),          # W1 (in, out)
                pl.BlockSpec((1, rC), lambda i: (0, 0)),          # b1 (row)
                pl.BlockSpec((rC, C), lambda i: (0, 0)),          # W2 (in, out)
                pl.BlockSpec((1, C), lambda i: (0, 0)),           # b2 (row)
            ],
            out_specs=pl.BlockSpec((nb, C, HW), lambda i: (i, 0, 0)),
        ),
        compiler_params=pltpu.CompilerParams(
            dimension_semantics=("parallel",),
            vmem_limit_bytes=vmem_limit),
        # The gate can write in place over x's HBM buffer when donated.
        input_output_aliases=({0: 0} if donate_input else {}),
    )(x, gamma_r, beta_r, w1_f, b1_r, w2_f, b2_r)

    return out.reshape(N, C, H, W)


def _reference(x_nchw, params):
    """Pure-JAX reference matching the PyTorch forward (full-f32 linears)."""
    gamma, beta, w1, b1, w2, b2 = params
    x = jnp.transpose(x_nchw, (0, 2, 3, 1))                # NHWC
    ori = x
    mu = jnp.mean(x, axis=-1, keepdims=True)
    var = jnp.mean((x - mu) ** 2, axis=-1, keepdims=True)
    xn = (x - mu) / jnp.sqrt(var + 1e-5) * gamma[0] + beta[0]
    xg = jnp.mean(xn, axis=(1, 2), keepdims=True)          # (N,1,1,C)
    hp = jax.lax.Precision.HIGHEST
    h = jnp.dot(xg, w1, precision=hp) + b1[0]
    h = 0.5 * h * (1.0 + jax.lax.erf(h / math.sqrt(2.0)))
    a = jax.nn.sigmoid(jnp.dot(h, w2, precision=hp) + b2[0])
    out = ori * a
    return jnp.transpose(out, (0, 3, 1, 2))


def make_params(key, in_channels, act_ratio=0.125):
    rC = int(in_channels * act_ratio)
    k1, k2, k3, k4 = jax.random.split(key, 4)
    gamma = jnp.ones((1, in_channels), jnp.float32)
    beta = jnp.zeros((1, in_channels), jnp.float32)
    # Linear weights stored as (in, out); deterministic synthetic init.
    w1 = jax.random.normal(k1, (in_channels, rC), jnp.float32) * 0.1
    b1 = jax.random.normal(k2, (1, rC), jnp.float32) * 0.1
    w2 = jax.random.normal(k3, (rC, in_channels), jnp.float32) * 0.1
    b2 = jax.random.normal(k4, (1, in_channels), jnp.float32) * 0.1
    return (gamma, beta, w1, b1, w2, b2)


if __name__ == "__main__":
    key = jax.random.PRNGKey(0)
    kx, kp = jax.random.split(key)

    N, C, H, W = 2, 32, 16, 16          # in_channels=32 -> reduce_channels=4; H*W=256
    x = jax.random.normal(kx, (N, C, H, W), jnp.float32)
    params = make_params(kp, C)

    ref = jax.block_until_ready(_reference(x, params))
    out = jax.block_until_ready(bc_attn_pallas(x, params))

    assert out.shape == (N, C, H, W)
    assert out.dtype == x.dtype
    err = float(jnp.max(jnp.abs(out - ref)))
    assert jnp.allclose(out, ref, atol=1e-4, rtol=1e-4), err
    print("KERNEL_OK")
</pallas_src>

<mosaic_0001>
module attributes {stable_mosaic.version = 11 : i64} {
  func.func @_bc_attn_kernel(%arg0: i32, %arg1: memref<2x32x256xf32, #tpu.memory_space<vmem>>, %arg2: memref<1x32xf32, #tpu.memory_space<vmem>>, %arg3: memref<1x32xf32, #tpu.memory_space<vmem>>, %arg4: memref<32x4xf32, #tpu.memory_space<vmem>>, %arg5: memref<1x4xf32, #tpu.memory_space<vmem>>, %arg6: memref<4x32xf32, #tpu.memory_space<vmem>>, %arg7: memref<1x32xf32, #tpu.memory_space<vmem>>, %arg8: memref<2x32x256xf32, #tpu.memory_space<vmem>>) attributes {dimension_semantics = [#tpu.dimension_semantics<parallel>], iteration_bounds = array<i64: 1>, scalar_prefetch = 0 : i64, scratch_operands = 0 : i64, tpu.core_type = #tpu.core_type<tc>, window_params = [{transform_indices = @transform_0, window_bounds = array<i64: 2, 32, 256>}, {pipeline_mode = #tpu.pipeline_mode<synchronous>, transform_indices = @transform_1, window_bounds = array<i64: 1, 32>}, {pipeline_mode = #tpu.pipeline_mode<synchronous>, transform_indices = @transform_2, window_bounds = array<i64: 1, 32>}, {pipeline_mode = #tpu.pipeline_mode<synchronous>, transform_indices = @transform_3, window_bounds = array<i64: 32, 4>}, {pipeline_mode = #tpu.pipeline_mode<synchronous>, transform_indices = @transform_4, window_bounds = array<i64: 1, 4>}, {pipeline_mode = #tpu.pipeline_mode<synchronous>, transform_indices = @transform_5, window_bounds = array<i64: 4, 32>}, {pipeline_mode = #tpu.pipeline_mode<synchronous>, transform_indices = @transform_6, window_bounds = array<i64: 1, 32>}, {transform_indices = @transform_7, window_bounds = array<i64: 2, 32, 256>}]} {
    %c0 = arith.constant 0 : index
    %c0_0 = arith.constant 0 : index
    %c0_1 = arith.constant 0 : index
    %0 = vector.load %arg1[%c0, %c0_0, %c0_1] : memref<2x32x256xf32, #tpu.memory_space<vmem>>, vector<2x32x256xf32>
    %cst = arith.constant dense<0.000000e+00> : vector<2x256xf32>
    %1 = vector.multi_reduction <add>, %0, %cst [1] : vector<2x32x256xf32> to vector<2x256xf32>
    %2 = vector.shape_cast %1 : vector<2x256xf32> to vector<2x1x256xf32>
    %cst_2 = arith.constant 3.125000e-02 : f32
    %3 = vector.broadcast %cst_2 : f32 to vector<2x1x256xf32>
    %4 = arith.mulf %2, %3 : vector<2x1x256xf32>
    %5 = vector.broadcast %4 : vector<2x1x256xf32> to vector<2x32x256xf32>
    %6 = arith.subf %0, %5 : vector<2x32x256xf32>
    %7 = arith.mulf %6, %6 : vector<2x32x256xf32>
    %cst_3 = arith.constant dense<0.000000e+00> : vector<2x256xf32>
    %8 = vector.multi_reduction <add>, %7, %cst_3 [1] : vector<2x32x256xf32> to vector<2x256xf32>
    %9 = vector.shape_cast %8 : vector<2x256xf32> to vector<2x1x256xf32>
    %cst_4 = arith.constant 3.125000e-02 : f32
    %10 = vector.broadcast %cst_4 : f32 to vector<2x1x256xf32>
    %11 = arith.mulf %9, %10 : vector<2x1x256xf32>
    %cst_5 = arith.constant 9.99999974E-6 : f32
    %12 = vector.broadcast %cst_5 : f32 to vector<2x1x256xf32>
    %13 = arith.addf %11, %12 : vector<2x1x256xf32>
    %14 = math.rsqrt %13 : vector<2x1x256xf32>
    %15 = vector.broadcast %14 : vector<2x1x256xf32> to vector<2x32x256xf32>
    %16 = arith.mulf %6, %15 : vector<2x32x256xf32>
    %cst_6 = arith.constant dense<0.000000e+00> : vector<2x32xf32>
    %17 = vector.multi_reduction <add>, %16, %cst_6 [2] : vector<2x32x256xf32> to vector<2x32xf32>
    %cst_7 = arith.constant 3.906250e-03 : f32
    %18 = vector.broadcast %cst_7 : f32 to vector<2x32xf32>
    %19 = arith.mulf %17, %18 : vector<2x32xf32>
    %c0_8 = arith.constant 0 : index
    %c0_9 = arith.constant 0 : index
    %20 = vector.load %arg2[%c0_8, %c0_9] : memref<1x32xf32, #tpu.memory_space<vmem>>, vector<1x32xf32>
    %21 = vector.broadcast %20 : vector<1x32xf32> to vector<2x32xf32>
    %22 = arith.mulf %19, %21 : vector<2x32xf32>
    %c0_10 = arith.constant 0 : index
    %c0_11 = arith.constant 0 : index
    %23 = vector.load %arg3[%c0_10, %c0_11] : memref<1x32xf32, #tpu.memory_space<vmem>>, vector<1x32xf32>
    %24 = vector.broadcast %23 : vector<1x32xf32> to vector<2x32xf32>
    %25 = arith.addf %22, %24 : vector<2x32xf32>
    %c0_12 = arith.constant 0 : index
    %c0_13 = arith.constant 0 : index
    %26 = vector.load %arg4[%c0_12, %c0_13] : memref<32x4xf32, #tpu.memory_space<vmem>>, vector<32x4xf32>
    %cst_14 = arith.constant dense<0.000000e+00> : vector<2x4xf32>
    %27 = tpu.matmul %25, %26, %cst_14 {dimension_numbers = #tpu.dot_dimension_numbers<[1], [0], [0], [1], [0, 0, 1, 1], [], []>, precision = #tpu.contract_precision<fp32>} : vector<2x32xf32>, vector<32x4xf32>, vector<2x4xf32> -> vector<2x4xf32>
    %c0_15 = arith.constant 0 : index
    %c0_16 = arith.constant 0 : index
    %28 = vector.load %arg5[%c0_15, %c0_16] : memref<1x4xf32, #tpu.memory_space<vmem>>, vector<1x4xf32>
    %29 = vector.broadcast %28 : vector<1x4xf32> to vector<2x4xf32>
    %30 = arith.addf %27, %29 : vector<2x4xf32>
    %cst_17 = arith.constant 5.000000e-01 : f32
    %31 = vector.broadcast %cst_17 : f32 to vector<2x4xf32>
    %32 = arith.mulf %31, %30 : vector<2x4xf32>
    %cst_18 = arith.constant 0.707106769 : f32
    %33 = vector.broadcast %cst_18 : f32 to vector<2x4xf32>
    %34 = arith.mulf %30, %33 : vector<2x4xf32>
    %35 = math.erf %34 : vector<2x4xf32>
    %cst_19 = arith.constant 1.000000e+00 : f32
    %36 = vector.broadcast %cst_19 : f32 to vector<2x4xf32>
    %37 = arith.addf %36, %35 : vector<2x4xf32>
    %38 = arith.mulf %32, %37 : vector<2x4xf32>
    %c0_20 = arith.constant 0 : index
    %c0_21 = arith.constant 0 : index
    %39 = vector.load %arg6[%c0_20, %c0_21] : memref<4x32xf32, #tpu.memory_space<vmem>>, vector<4x32xf32>
    %cst_22 = arith.constant dense<0.000000e+00> : vector<2x32xf32>
    %40 = tpu.matmul %38, %39, %cst_22 {dimension_numbers = #tpu.dot_dimension_numbers<[1], [0], [0], [1], [0, 0, 1, 1], [], []>, precision = #tpu.contract_precision<fp32>} : vector<2x4xf32>, vector<4x32xf32>, vector<2x32xf32> -> vector<2x32xf32>
    %c0_23 = arith.constant 0 : index
    %c0_24 = arith.constant 0 : index
    %41 = vector.load %arg7[%c0_23, %c0_24] : memref<1x32xf32, #tpu.memory_space<vmem>>, vector<1x32xf32>
    %42 = vector.broadcast %41 : vector<1x32xf32> to vector<2x32xf32>
    %43 = arith.addf %40, %42 : vector<2x32xf32>
    %44 = arith.negf %43 : vector<2x32xf32>
    %45 = math.exp %44 : vector<2x32xf32>
    %cst_25 = arith.constant 1.000000e+00 : f32
    %46 = vector.broadcast %cst_25 : f32 to vector<2x32xf32>
    %47 = arith.addf %46, %45 : vector<2x32xf32>
    %48 = arith.divf %46, %47 : vector<2x32xf32>
    %49 = vector.shape_cast %48 : vector<2x32xf32> to vector<2x32x1xf32>
    %50 = vector.broadcast %49 : vector<2x32x1xf32> to vector<2x32x256xf32>
    %51 = arith.mulf %0, %50 : vector<2x32x256xf32>
    %c0_26 = arith.constant 0 : index
    %c0_27 = arith.constant 0 : index
    %c0_28 = arith.constant 0 : index
    %52 = vector.load %arg8[%c0_26, %c0_27, %c0_28] : memref<2x32x256xf32, #tpu.memory_space<vmem>>, vector<2x32x256xf32>
    tpu.vector_store %arg8[%c0_26, %c0_27, %c0_28], %51 {strides = array<i32>} : memref<2x32x256xf32, #tpu.memory_space<vmem>>, vector<2x32x256xf32>,
    return
  }
  func.func @transform_0(%arg0: i32) -> (i32, i32, i32) {
    %c0_i32 = arith.constant 0 : i32
    %c0_i32_0 = arith.constant 0 : i32
    %c0_i32_1 = arith.constant 0 : i32
    return %arg0, %c0_i32, %c0_i32_0 : i32, i32, i32
  }
  func.func @transform_1(%arg0: i32) -> (i32, i32) {
    %c0_i32 = arith.constant 0 : i32
    %c0_i32_0 = arith.constant 0 : i32
    %c0_i32_1 = arith.constant 0 : i32
    return %c0_i32, %c0_i32_0 : i32, i32
  }
  func.func @transform_2(%arg0: i32) -> (i32, i32) {
    %c0_i32 = arith.constant 0 : i32
    %c0_i32_0 = arith.constant 0 : i32
    %c0_i32_1 = arith.constant 0 : i32
    return %c0_i32, %c0_i32_0 : i32, i32
  }
  func.func @transform_3(%arg0: i32) -> (i32, i32) {
    %c0_i32 = arith.constant 0 : i32
    %c0_i32_0 = arith.constant 0 : i32
    %c0_i32_1 = arith.constant 0 : i32
    return %c0_i32, %c0_i32_0 : i32, i32
  }
  func.func @transform_4(%arg0: i32) -> (i32, i32) {
    %c0_i32 = arith.constant 0 : i32
    %c0_i32_0 = arith.constant 0 : i32
    %c0_i32_1 = arith.constant 0 : i32
    return %c0_i32, %c0_i32_0 : i32, i32
  }
  func.func @transform_5(%arg0: i32) -> (i32, i32) {
    %c0_i32 = arith.constant 0 : i32
    %c0_i32_0 = arith.constant 0 : i32
    %c0_i32_1 = arith.constant 0 : i32
    return %c0_i32, %c0_i32_0 : i32, i32
  }
  func.func @transform_6(%arg0: i32) -> (i32, i32) {
    %c0_i32 = arith.constant 0 : i32
    %c0_i32_0 = arith.constant 0 : i32
    %c0_i32_1 = arith.constant 0 : i32
    return %c0_i32, %c0_i32_0 : i32, i32
  }
  func.func @transform_7(%arg0: i32) -> (i32, i32, i32) {
    %c0_i32 = arith.constant 0 : i32
    %c0_i32_0 = arith.constant 0 : i32
    %c0_i32_1 = arith.constant 0 : i32
    return %arg0, %c0_i32, %c0_i32_0 : i32, i32, i32
  }
}

</mosaic_0001>

<llo_original>
// kernel: tpu_custom_call.1
$region0: #{tpu_custom_call.1}
  #allocation0 [shape = 'u32[]', space=smem, size = 0x4, offset = 0x4, fixed_abs, tag = 'smem constant byte address 0x4 - core index']
  #allocation1 [shape = 'u32[144,128]{1,0:T(1,128)}', space=vmem, size = 0x12000, scoped, tag = 'internal scratch']
  %s0 = inlined_call_operand.hbm [shape: f32[2,32,256], index: 0, kind: input, shape index: {}]
  %s1 = inlined_call_operand.vmem [shape: f32[1,32], index: 1, kind: input, shape index: {}]
  %s2 = inlined_call_operand.vmem [shape: f32[1,32], index: 2, kind: input, shape index: {}]
  %s3 = inlined_call_operand.vmem [shape: f32[32,4], index: 3, kind: input, shape index: {}]
  %s4 = inlined_call_operand.vmem [shape: f32[1,4], index: 4, kind: input, shape index: {}]
  %s5 = inlined_call_operand.vmem [shape: f32[4,32], index: 5, kind: input, shape index: {}]
  %s6 = inlined_call_operand.vmem [shape: f32[1,32], index: 6, kind: input, shape index: {}]
  %s7 = inlined_call_operand.hbm [shape: f32[2,32,256], index: 7, kind: output, shape index: {}]
  %s8 = sld [smem:[#allocation0]]
  $region42: #{tpu_custom_call.1} parent=0
    _
  %s10 = ssub.s32 1, %s8
  %s11 = scalar_select 0, %s10, %s8
  $region1: #{tpu_custom_call.1} parent=0
    #allocation2 [shape = 'u8[65536]{0}', space=vmem, size = 0x10000, scoped, tag = 'input window, operand 0, single buffered']
    #allocation3 [shape = 's32[1]{0}', space=sflag, size = 0x4, scoped, tag = 'scoped memory for tpu_custom_call.1']
    #allocation4 [shape = 's32[1]{0}', space=sflag, size = 0x4, scoped, tag = 'scoped memory for tpu_custom_call.1']
    #allocation5 [shape = 'u8[65536]{0}', space=vmem, size = 0x10000, scoped, tag = 'output window, operand 0, single buffered']
    %12 = vsyncpa [#allocation3], 0
    %13 = vsyncpa [#allocation4], 0
    // Predicated region
    $region2: #{tpu_custom_call.1} parent=1 // pred_check
      _
    $region3: #{tpu_custom_call.1} parent=1 // pred_check_branch
      %15 = sbr.rel (0) target = $region5
    $region4: #{tpu_custom_call.1} parent=1 // pred_region
      %s17 = ssub.s32 2048, 2048
      %18 = vsyncadd [#allocation3], %s17
      %s19 = sshll.u32 [#allocation2], 4
      %s20 = int_to_ptr.vmem [resolvable:$true] %s19
      %25 = dma.hbm_to_vmem [thread:$0]  %s0, 2048, %s20, [#allocation3], 256, 256, 16
    $region5: #{tpu_custom_call.1} parent=1 // pred_fallthru
      _
    // Predicated region
    $region6: #{tpu_custom_call.1} parent=1 // pred_check
      _
    $region7: #{tpu_custom_call.1} parent=1 // pred_check_branch
      %27 = sbr.rel (0) target = $region9
    $region8: #{tpu_custom_call.1} parent=1 // pred_region
      _
    $region9: #{tpu_custom_call.1} parent=1 // pred_fallthru
      _
    // Predicated region
    $region10: #{tpu_custom_call.1} parent=1 // pred_check
      _
    $region11: #{tpu_custom_call.1} parent=1 // pred_check_branch
      %29 = sbr.rel (0) target = $region13
    $region12: #{tpu_custom_call.1} parent=1 // pred_region
      _
    $region13: #{tpu_custom_call.1} parent=1 // pred_fallthru
      _
    // Predicated region
    $region14: #{tpu_custom_call.1} parent=1 // pred_check
      _
    $region15: #{tpu_custom_call.1} parent=1 // pred_check_branch
      %31 = sbr.rel (0) target = $region17
    $region16: #{tpu_custom_call.1} parent=1 // pred_region
      _
    $region17: #{tpu_custom_call.1} parent=1 // pred_fallthru
      _
    // Predicated region
    $region18: #{tpu_custom_call.1} parent=1 // pred_check
      _
    $region19: #{tpu_custom_call.1} parent=1 // pred_check_branch
      %33 = sbr.rel (0) target = $region21
    $region20: #{tpu_custom_call.1} parent=1 // pred_region
      _
    $region21: #{tpu_custom_call.1} parent=1 // pred_fallthru
      _
    // Predicated region
    $region22: #{tpu_custom_call.1} parent=1 // pred_check
      _
    $region23: #{tpu_custom_call.1} parent=1 // pred_check_branch
      %35 = sbr.rel (0) target = $region25
    $region24: #{tpu_custom_call.1} parent=1 // pred_region
      _
    $region25: #{tpu_custom_call.1} parent=1 // pred_fallthru
      _
    // Predicated region
    $region26: #{tpu_custom_call.1} parent=1 // pred_check
      _
    $region27: #{tpu_custom_call.1} parent=1 // pred_check_branch
      %37 = sbr.rel (0) target = $region29
    $region28: #{tpu_custom_call.1} parent=1 // pred_region
      _
    $region29: #{tpu_custom_call.1} parent=1 // pred_fallthru
      _
    // Predicated region
    $region30: #{tpu_custom_call.1} parent=1 // pred_check
      _
    $region31: #{tpu_custom_call.1} parent=1 // pred_check_branch
      %39 = sbr.rel (0) target = $region33
    $region32: #{tpu_custom_call.1} parent=1 // pred_region
      %40 = dma.done [#allocation3], 2048
    $region33: #{tpu_custom_call.1} parent=1 // pred_fallthru
      _
    %v41 = vld [vmem:[#allocation2] sm:$0xff]
    %v42 = vld [vmem:[#allocation2 + $0x8] sm:$0xff]
    %v43 = vld [vmem:[#allocation2 + $0x10] sm:$0xff]
    %v44 = vld [vmem:[#allocation2 + $0x18] sm:$0xff]
    %v45 = vld [vmem:[#allocation2 + $0x20] sm:$0xff]
    %v46 = vld [vmem:[#allocation2 + $0x28] sm:$0xff]
    %v47 = vld [vmem:[#allocation2 + $0x30] sm:$0xff]
    %v48 = vld [vmem:[#allocation2 + $0x38] sm:$0xff]
    %v49 = vld [vmem:[#allocation2 + $0x40] sm:$0xff]
    %v50 = vld [vmem:[#allocation2 + $0x48] sm:$0xff]
    %v51 = vld [vmem:[#allocation2 + $0x50] sm:$0xff]
    %v52 = vld [vmem:[#allocation2 + $0x58] sm:$0xff]
    %v53 = vld [vmem:[#allocation2 + $0x60] sm:$0xff]
    %v54 = vld [vmem:[#allocation2 + $0x68] sm:$0xff]
    %v55 = vld [vmem:[#allocation2 + $0x70] sm:$0xff]
    %v56 = vld [vmem:[#allocation2 + $0x78] sm:$0xff]
    %v57 = vadd.f32 %v41, %v43
    %v58 = vadd.f32 %v57, %v45
    %v59 = vadd.f32 %v58, %v47
    %v60 = vrot.slane %v59, 4
    %v61 = vadd.f32 %v59, %v60
    %v62 = vrot.slane %v61, 2
    %v63 = vadd.f32 %v61, %v62
    %v64 = vrot.slane %v63, 1
    %v65 = vadd.f32 %v63, %v64
    %v66 = vadd.f32 %v42, %v44
    %v67 = vadd.f32 %v66, %v46
    %v68 = vadd.f32 %v67, %v48
    %v69 = vrot.slane %v68, 4
    %v70 = vadd.f32 %v68, %v69
    %v71 = vrot.slane %v70, 2
    %v72 = vadd.f32 %v70, %v71
    %v73 = vrot.slane %v72, 1
    %v74 = vadd.f32 %v72, %v73
    %v75 = vadd.f32 %v49, %v51
    %v76 = vadd.f32 %v75, %v53
    %v77 = vadd.f32 %v76, %v55
    %v78 = vrot.slane %v77, 4
    %v79 = vadd.f32 %v77, %v78
    %v80 = vrot.slane %v79, 2
    %v81 = vadd.f32 %v79, %v80
    %v82 = vrot.slane %v81, 1
    %v83 = vadd.f32 %v81, %v82
    %v84 = vadd.f32 %v50, %v52
    %v85 = vadd.f32 %v84, %v54
    %v86 = vadd.f32 %v85, %v56
    %v87 = vrot.slane %v86, 4
    %v88 = vadd.f32 %v86, %v87
    %v89 = vrot.slane %v88, 2
    %v90 = vadd.f32 %v88, %v89
    %v91 = vrot.slane %v90, 1
    %v92 = vadd.f32 %v90, %v91
    %v93 = vmul.f32 %v65, 0.03125
    %v94 = vmul.f32 %v74, 0.03125
    %v95 = vmul.f32 %v83, 0.03125
    %v96 = vmul.f32 %v92, 0.03125
    %v97 = vsub.f32 %v41, %v93
    %v98 = vsub.f32 %v42, %v94
    %v99 = vsub.f32 %v43, %v93
    %v100 = vsub.f32 %v44, %v94
    %v101 = vsub.f32 %v45, %v93
    %v102 = vsub.f32 %v46, %v94
    %v103 = vsub.f32 %v47, %v93
    %v104 = vsub.f32 %v48, %v94
    %v105 = vsub.f32 %v49, %v95
    %v106 = vsub.f32 %v50, %v96
    %v107 = vsub.f32 %v51, %v95
    %v108 = vsub.f32 %v52, %v96
    %v109 = vsub.f32 %v53, %v95
    %v110 = vsub.f32 %v54, %v96
    %v111 = vsub.f32 %v55, %v95
    %v112 = vsub.f32 %v56, %v96
    %v113 = vmul.f32 %v97, %v97
    %v114 = vmul.f32 %v98, %v98
    %v115 = vmul.f32 %v99, %v99
    %v116 = vmul.f32 %v100, %v100
    %v117 = vmul.f32 %v101, %v101
    %v118 = vmul.f32 %v102, %v102
    %v119 = vmul.f32 %v103, %v103
    %v120 = vmul.f32 %v104, %v104
    %v121 = vmul.f32 %v105, %v105
    %v122 = vmul.f32 %v106, %v106
    %v123 = vmul.f32 %v107, %v107
    %v124 = vmul.f32 %v108, %v108
    %v125 = vmul.f32 %v109, %v109
    %v126 = vmul.f32 %v110, %v110
    %v127 = vmul.f32 %v111, %v111
    %v128 = vmul.f32 %v112, %v112
    %v129 = vadd.f32 %v113, %v115
    %v130 = vadd.f32 %v129, %v117
    %v131 = vadd.f32 %v130, %v119
    %v132 = vrot.slane %v131, 4
    %v133 = vadd.f32 %v131, %v132
    %v134 = vrot.slane %v133, 2
    %v135 = vadd.f32 %v133, %v134
    %v136 = vrot.slane %v135, 1
    %v137 = vadd.f32 %v135, %v136
    %v138 = vadd.f32 %v114, %v116
    %v139 = vadd.f32 %v138, %v118
    %v140 = vadd.f32 %v139, %v120
    %v141 = vrot.slane %v140, 4
    %v142 = vadd.f32 %v140, %v141
    %v143 = vrot.slane %v142, 2
    %v144 = vadd.f32 %v142, %v143
    %v145 = vrot.slane %v144, 1
    %v146 = vadd.f32 %v144, %v145
    %v147 = vadd.f32 %v121, %v123
    %v148 = vadd.f32 %v147, %v125
    %v149 = vadd.f32 %v148, %v127
    %v150 = vrot.slane %v149, 4
    %v151 = vadd.f32 %v149, %v150
    %v152 = vrot.slane %v151, 2
    %v153 = vadd.f32 %v151, %v152
    %v154 = vrot.slane %v153, 1
    %v155 = vadd.f32 %v153, %v154
    %v156 = vadd.f32 %v122, %v124
    %v157 = vadd.f32 %v156, %v126
    %v158 = vadd.f32 %v157, %v128
    %v159 = vrot.slane %v158, 4
    %v160 = vadd.f32 %v158, %v159
    %v161 = vrot.slane %v160, 2
    %v162 = vadd.f32 %v160, %v161
    %v163 = vrot.slane %v162, 1
    %v164 = vadd.f32 %v162, %v163
    %v165 = vmul.f32 %v137, 0.03125
    %v166 = vmul.f32 %v146, 0.03125
    %v167 = vmul.f32 %v155, 0.03125
    %v168 = vmul.f32 %v164, 0.03125
    %v169 = vadd.f32 %v165, 1e-05
    %v170 = vadd.f32 %v166, 1e-05
    %v171 = vadd.f32 %v167, 1e-05
    %v172 = vadd.f32 %v168, 1e-05
    %v173 = vrsqrt.pop %v169
    %v174 = vrsqrt.pop %v170
    %v175 = vrsqrt.pop %v171
    %v176 = vrsqrt.pop %v172
    %v177 = vmul.f32 %v97, %v173
    %v178 = vmul.f32 %v98, %v174
    %v179 = vmul.f32 %v99, %v173
    %v180 = vmul.f32 %v100, %v174
    %v181 = vmul.f32 %v101, %v173
    %v182 = vmul.f32 %v102, %v174
    %v183 = vmul.f32 %v103, %v173
    %v184 = vmul.f32 %v104, %v174
    %v185 = vmul.f32 %v105, %v175
    %v186 = vmul.f32 %v106, %v176
    %v187 = vmul.f32 %v107, %v175
    %v188 = vmul.f32 %v108, %v176
    %v189 = vmul.f32 %v109, %v175
    %v190 = vmul.f32 %v110, %v176
    %v191 = vmul.f32 %v111, %v175
    %v192 = vmul.f32 %v112, %v176
    %v193 = vadd.f32 %v177, %v178
    %194 = vadd.xlane.f32.xlu0 %v193
    %v195 = vpop.xlane.xlu0 %194
    %v196 = vadd.f32 %v179, %v180
    %197 = vadd.xlane.f32.xlu0 %v196
    %v198 = vpop.xlane.xlu0 %197
    %v199 = vadd.f32 %v181, %v182
    %200 = vadd.xlane.f32.xlu0 %v199
    %v201 = vpop.xlane.xlu0 %200
    %v202 = vadd.f32 %v183, %v184
    %203 = vadd.xlane.f32.xlu0 %v202
    %v204 = vpop.xlane.xlu0 %203
    %v205 = vadd.f32 %v185, %v186
    %206 = vadd.xlane.f32.xlu0 %v205
    %v207 = vpop.xlane.xlu0 %206
    %v208 = vadd.f32 %v187, %v188
    %209 = vadd.xlane.f32.xlu0 %v208
    %v210 = vpop.xlane.xlu0 %209
    %v211 = vadd.f32 %v189, %v190
    %212 = vadd.xlane.f32.xlu0 %v211
    %v213 = vpop.xlane.xlu0 %212
    %v214 = vadd.f32 %v191, %v192
    %215 = vadd.xlane.f32.xlu0 %v214
    %v216 = vpop.xlane.xlu0 %215
    %v217 = vmul.f32 %v195, 0.00390625
    %v218 = vmul.f32 %v198, 0.00390625
    %v219 = vmul.f32 %v201, 0.00390625
    %v220 = vmul.f32 %v204, 0.00390625
    %v221 = vmul.f32 %v207, 0.00390625
    %v222 = vmul.f32 %v210, 0.00390625
    %v223 = vmul.f32 %v213, 0.00390625
    %v224 = vmul.f32 %v216, 0.00390625
    %v225 = vld [vmem:[%s1] sm:$0x1]
    %v227 = vlaneseq
    %v228 = vshrl.u32 %v227, 7
    %v229 = vsub.s32 0, %v228
    %v230 = vrot.slane %v225, %v229
    %232 = vbcast.lane.b32.xlu0 %v230, 256
    %v233 = vpop.permute.xlu0 %232
    %s235 = sor.u32 256, 8
    %236 = vbcast.lane.b32.xlu0 %v230, %s235
    %v237 = vpop.permute.xlu0 %236
    %s239 = sor.u32 256, 16
    %240 = vbcast.lane.b32.xlu0 %v230, %s239
    %v241 = vpop.permute.xlu0 %240
    %s243 = sor.u32 256, 24
    %244 = vbcast.lane.b32.xlu0 %v230, %s243
    %v245 = vpop.permute.xlu0 %244
    %v250 = vmul.f32 %v217, %v233
    %v251 = vmul.f32 %v218, %v237
    %v252 = vmul.f32 %v219, %v241
    %v253 = vmul.f32 %v220, %v245
    %v254 = vmul.f32 %v221, %v233
    %v255 = vmul.f32 %v222, %v237
    %v256 = vmul.f32 %v223, %v241
    %v257 = vmul.f32 %v224, %v245
    %v258 = vld [vmem:[%s2] sm:$0x1]
    %v260 = vlaneseq
    %v261 = vshrl.u32 %v260, 7
    %v262 = vsub.s32 0, %v261
    %v263 = vrot.slane %v258, %v262
    %265 = vbcast.lane.b32.xlu0 %v263, 256
    %v266 = vpop.permute.xlu0 %265
    %s268 = sor.u32 256, 8
    %269 = vbcast.lane.b32.xlu0 %v263, %s268
    %v270 = vpop.permute.xlu0 %269
    %s272 = sor.u32 256, 16
    %273 = vbcast.lane.b32.xlu0 %v263, %s272
    %v274 = vpop.permute.xlu0 %273
    %s276 = sor.u32 256, 24
    %277 = vbcast.lane.b32.xlu0 %v263, %s276
    %v278 = vpop.permute.xlu0 %277
    %v283 = vadd.f32 %v250, %v266
    %v284 = vadd.f32 %v251, %v270
    %v285 = vadd.f32 %v252, %v274
    %v286 = vadd.f32 %v253, %v278
    %v287 = vadd.f32 %v254, %v266
    %v288 = vadd.f32 %v255, %v270
    %v289 = vadd.f32 %v256, %v274
    %v290 = vadd.f32 %v257, %v278
    %v291 = vld [vmem:[%s3] sm:$0xff]
    %v292 = vld [vmem:[%s3 + $0x8] sm:$0xff]
    %v293 = vld [vmem:[%s3 + $0x10] sm:$0xff]
    %v294 = vld [vmem:[%s3 + $0x18] sm:$0xff]
    %v295 = vld [vmem:[%s4] sm:$0x1]
    %v297 = vlaneseq
    %v298 = vshrl.u32 %v297, 7
    %v299 = vsub.s32 0, %v298
    %v300 = vrot.slane %v295, %v299
    %310 = vset.pattern.permute.xlu0 0
    %311 = vperm.xlu0 %310, %v283
    %v312 = vpop.permute.xlu0 %311
    %313 = vset.pattern.permute.xlu0 0
    %314 = vperm.xlu0 %313, %v284
    %v315 = vpop.permute.xlu0 %314
    %316 = vset.pattern.permute.xlu0 0
    %317 = vperm.xlu0 %316, %v285
    %v318 = vpop.permute.xlu0 %317
    %319 = vset.pattern.permute.xlu0 0
    %320 = vperm.xlu0 %319, %v286
    %v321 = vpop.permute.xlu0 %320
    %322 = vset.pattern.permute.xlu0 0
    %323 = vperm.xlu0 %322, %v287
    %v324 = vpop.permute.xlu0 %323
    %325 = vset.pattern.permute.xlu0 0
    %326 = vperm.xlu0 %325, %v288
    %v327 = vpop.permute.xlu0 %326
    %328 = vset.pattern.permute.xlu0 0
    %329 = vperm.xlu0 %328, %v289
    %v330 = vpop.permute.xlu0 %329
    %331 = vset.pattern.permute.xlu0 0
    %332 = vperm.xlu0 %331, %v290
    %v333 = vpop.permute.xlu0 %332
    %v334 = vlaneseq
    %v335 = vand.u32 %v334, 127
    %v336 = vlaneseq
    %v337 = vshrl.u32 %v336, 7
    %v338 = vsub.s32 %v335, %v337
    %v339 = vrot.slane %v312, %v338
    %v340 = vadd.s32 %v335, 4294967288
    %v341 = vlaneseq
    %v342 = vshrl.u32 %v341, 7
    %v343 = vsub.s32 %v340, %v342
    %v344 = vrot.slane %v315, %v343
    %vm345 = vcmask 130112
    %v346 = vsel %vm345, %v344, %v339
    %v347 = vadd.s32 %v335, 4294967280
    %v348 = vlaneseq
    %v349 = vshrl.u32 %v348, 7
    %v350 = vsub.s32 %v347, %v349
    %v351 = vrot.slane %v318, %v350
    %vm352 = vcmask 195712
    %v353 = vsel %vm352, %v351, %v346
    %v354 = vadd.s32 %v335, 4294967272
    %v355 = vlaneseq
    %v356 = vshrl.u32 %v355, 7
    %v357 = vsub.s32 %v354, %v356
    %v358 = vrot.slane %v321, %v357
    %vm359 = vcmask 261312
    %v360 = vsel %vm359, %v358, %v353
    %v361 = vlaneseq
    %v362 = vshrl.u32 %v361, 7
    %v363 = vsub.s32 %v335, %v362
    %v364 = vrot.slane %v324, %v363
    %v365 = vlaneseq
    %v366 = vshrl.u32 %v365, 7
    %v367 = vsub.s32 %v340, %v366
    %v368 = vrot.slane %v327, %v367
    %v369 = vsel %vm345, %v368, %v364
    %v370 = vlaneseq
    %v371 = vshrl.u32 %v370, 7
    %v372 = vsub.s32 %v347, %v371
    %v373 = vrot.slane %v330, %v372
    %v374 = vsel %vm352, %v373, %v369
    %v375 = vlaneseq
    %v376 = vshrl.u32 %v375, 7
    %v377 = vsub.s32 %v354, %v376
    %v378 = vrot.slane %v333, %v377
    %v379 = vsel %vm359, %v378, %v374
    %vm380 = vcmask 1041409
    %v381 = vsel %vm380, %v379, %v360
    %vm382 = vcmask 261120
    %v383 = vsel %vm382, %v381, 0
    %385 = vmatprep.subr.mxu0 0.0
    %v386 = vand.u32 %v291, 4294901760
    %387 = vmatpush1.msra.mxu0 %v386
    %388 = vmatprep.subr.mxu0 0.0
    %v389 = vand.u32 %v292, 4294901760
    %390 = vmatpush1.msra.mxu0 %v389
    %391 = vmatprep.subr.mxu0 0.0
    %v392 = vand.u32 %v293, 4294901760
    %393 = vmatpush1.msra.mxu0 %v392
    %394 = vmatprep.subr.mxu0 0.0
    %v395 = vand.u32 %v294, 4294901760
    %396 = vmatpush1.msra.mxu0 %v395
    %397 = vmatprep.subr.mxu0 0.0
    %398 = vmatpush1.msra.mxu0 0.0
    %399 = vmatprep.subr.mxu0 0.0
    %400 = vmatpush1.msra.mxu0 0.0
    %401 = vmatprep.subr.mxu0 0.0
    %402 = vmatpush1.msra.mxu0 0.0
    %403 = vmatprep.subr.mxu0 0.0
    %404 = vmatpush1.msra.mxu0 0.0
    %405 = vmatprep.subr.mxu0 0.0
    %406 = vmatpush1.msra.mxu0 0.0
    %407 = vmatprep.subr.mxu0 0.0
    %408 = vmatpush1.msra.mxu0 0.0
    %409 = vmatprep.subr.mxu0 0.0
    %410 = vmatpush1.msra.mxu0 0.0
    %411 = vmatprep.subr.mxu0 0.0
    %412 = vmatpush1.msra.mxu0 0.0
    %413 = vmatprep.subr.mxu0 0.0
    %414 = vmatpush1.msra.mxu0 0.0
    %415 = vmatprep.subr.mxu0 0.0
    %416 = vmatpush1.msra.mxu0 0.0
    %417 = vmatprep.subr.mxu0 0.0
    %418 = vmatpush1.msra.mxu0 0.0
    %419 = vmatprep.subr.mxu0 0.0
    %420 = vmatpush1.msra.mxu0 0.0
    %421 = vmatprep.subr.mxu0 0.0
    %422 = vmatpush1.msra.mxu0 0.0
    %423 = vmatprep.subr.mxu0 0.0
    %424 = vmatpush1.msra.mxu0 0.0
    %425 = vmatprep.subr.mxu0 0.0
    %426 = vmatpush1.msra.mxu0 0.0
    %427 = vmatprep.subr.mxu0 0.0
    %428 = vmatpush1.msra.mxu0 0.0
    %429 = vmatprep.subr.mxu0 0.0
    %430 = vmatpush1.msra.mxu0 0.0
    %431 = vmatprep.subr.mxu0 0.0
    %432 = vmatpush1.msra.mxu0 0.0
    %433 = vmatprep.subr.mxu0 0.0
    %434 = vmatpush1.msra.mxu0 0.0
    %435 = vmatprep.subr.mxu0 0.0
    %436 = vmatpush1.msra.mxu0 0.0
    %437 = vmatprep.subr.mxu0 0.0
    %438 = vmatpush1.msra.mxu0 0.0
    %439 = vmatprep.subr.mxu0 0.0
    %440 = vmatpush1.msra.mxu0 0.0
    %441 = vmatprep.subr.mxu0 0.0
    %442 = vmatpush1.msra.mxu0 0.0
    %443 = vmatprep.subr.mxu0 0.0
    %444 = vmatpush1.msra.mxu0 0.0
    %445 = vmatprep.subr.mxu0 0.0
    %446 = vmatpush1.msra.mxu0 0.0
    %447 = vmatprep.subr.mxu0 0.0
    %448 = vmatpush1.msra.mxu0 0.0
    %449 = vmatprep.subr.mxu0 0.0
    %450 = vmatpush1.msra.mxu0 0.0
    %451 = vmatprep.subr.mxu0 0.0
    %452 = vmatpush1.msra.mxu0 0.0
    %453 = vmatprep.mubr.f32.mxu0 0.0
    %v454 = vand.u32 %v383, 4294901760
    %v455 = vsub.f32 %v383, %v454
    %v456 = vand.u32 %v455, 4294901760
    %v457 = vsub.f32 %v455, %v456
    %v458 = vand.u32 %v457, 4294901760
    %459 = vmatmul.mubr.f32.gmra.mrb[0].mxu0 %v458
    %v460 = vpop.f32.mrb[0].mxu0
    %v461 = vadd.f32 %v300, %v460
    %v462 = vpop.f32.mrb[0].mxu0
    %463 = vdwg.mxu0
    %464 = vmatprep.subr.mxu0 0.0
    %v465 = vand.u32 %v291, 4294901760
    %v466 = vsub.f32 %v291, %v465
    %v467 = vand.u32 %v466, 4294901760
    %v468 = vsub.f32 %v466, %v467
    %v469 = vand.u32 %v468, 4294901760
    %470 = vmatpush1.msra.mxu0 %v469
    %471 = vmatprep.subr.mxu0 0.0
    %v472 = vand.u32 %v292, 4294901760
    %v473 = vsub.f32 %v292, %v472
    %v474 = vand.u32 %v473, 4294901760
    %v475 = vsub.f32 %v473, %v474
    %v476 = vand.u32 %v475, 4294901760
    %477 = vmatpush1.msra.mxu0 %v476
    %478 = vmatprep.subr.mxu0 0.0
    %v479 = vand.u32 %v293, 4294901760
    %v480 = vsub.f32 %v293, %v479
    %v481 = vand.u32 %v480, 4294901760
    %v482 = vsub.f32 %v480, %v481
    %v483 = vand.u32 %v482, 4294901760
    %484 = vmatpush1.msra.mxu0 %v483
    %485 = vmatprep.subr.mxu0 0.0
    %v486 = vand.u32 %v294, 4294901760
    %v487 = vsub.f32 %v294, %v486
    %v488 = vand.u32 %v487, 4294901760
    %v489 = vsub.f32 %v487, %v488
    %v490 = vand.u32 %v489, 4294901760
    %491 = vmatpush1.msra.mxu0 %v490
    %492 = vmatprep.subr.mxu0 0.0
    %493 = vmatpush1.msra.mxu0 0.0
    %494 = vmatprep.subr.mxu0 0.0
    %495 = vmatpush1.msra.mxu0 0.0
    %496 = vmatprep.subr.mxu0 0.0
    %497 = vmatpush1.msra.mxu0 0.0
    %498 = vmatprep.subr.mxu0 0.0
    %499 = vmatpush1.msra.mxu0 0.0
    %500 = vmatprep.subr.mxu0 0.0
    %501 = vmatpush1.msra.mxu0 0.0
    %502 = vmatprep.subr.mxu0 0.0
    %503 = vmatpush1.msra.mxu0 0.0
    %504 = vmatprep.subr.mxu0 0.0
    %505 = vmatpush1.msra.mxu0 0.0
    %506 = vmatprep.subr.mxu0 0.0
    %507 = vmatpush1.msra.mxu0 0.0
    %508 = vmatprep.subr.mxu0 0.0
    %509 = vmatpush1.msra.mxu0 0.0
    %510 = vmatprep.subr.mxu0 0.0
    %511 = vmatpush1.msra.mxu0 0.0
    %512 = vmatprep.subr.mxu0 0.0
    %513 = vmatpush1.msra.mxu0 0.0
    %514 = vmatprep.subr.mxu0 0.0
    %515 = vmatpush1.msra.mxu0 0.0
    %516 = vmatprep.subr.mxu0 0.0
    %517 = vmatpush1.msra.mxu0 0.0
    %518 = vmatprep.subr.mxu0 0.0
    %519 = vmatpush1.msra.mxu0 0.0
    %520 = vmatprep.subr.mxu0 0.0
    %521 = vmatpush1.msra.mxu0 0.0
    %522 = vmatprep.subr.mxu0 0.0
    %523 = vmatpush1.msra.mxu0 0.0
    %524 = vmatprep.subr.mxu0 0.0
    %525 = vmatpush1.msra.mxu0 0.0
    %526 = vmatprep.subr.mxu0 0.0
    %527 = vmatpush1.msra.mxu0 0.0
    %528 = vmatprep.subr.mxu0 0.0
    %529 = vmatpush1.msra.mxu0 0.0
    %530 = vmatprep.subr.mxu0 0.0
    %531 = vmatpush1.msra.mxu0 0.0
    %532 = vmatprep.subr.mxu0 0.0
    %533 = vmatpush1.msra.mxu0 0.0
    %534 = vmatprep.subr.mxu0 0.0
    %535 = vmatpush1.msra.mxu0 0.0
    %536 = vmatprep.subr.mxu0 0.0
    %537 = vmatpush1.msra.mxu0 0.0
    %538 = vmatprep.subr.mxu0 0.0
    %539 = vmatpush1.msra.mxu0 0.0
    %540 = vmatprep.subr.mxu0 0.0
    %541 = vmatpush1.msra.mxu0 0.0
    %542 = vmatprep.subr.mxu0 0.0
    %543 = vmatpush1.msra.mxu0 0.0
    %544 = vmatprep.subr.mxu0 0.0
    %545 = vmatpush1.msra.mxu0 0.0
    %546 = vmatprep.subr.mxu0 0.0
    %547 = vmatpush1.msra.mxu0 0.0
    %548 = vmatprep.mubr.f32.mxu0 0.0
    %v549 = vand.u32 %v383, 4294901760
    %550 = vmatmul.mubr.f32.gmra.mrb[0].mxu0 %v549
    %v551 = vpop.f32.mrb[0].mxu0
    %v552 = vadd.f32 %v461, %v551
    %v553 = vpop.f32.mrb[0].mxu0
    %554 = vdwg.mxu0
    %555 = vmatprep.subr.mxu0 0.0
    %v556 = vand.u32 %v291, 4294901760
    %v557 = vsub.f32 %v291, %v556
    %558 = vmatpush1.msra.mxu0 %v557
    %559 = vmatprep.subr.mxu0 0.0
    %v560 = vand.u32 %v292, 4294901760
    %v561 = vsub.f32 %v292, %v560
    %562 = vmatpush1.msra.mxu0 %v561
    %563 = vmatprep.subr.mxu0 0.0
    %v564 = vand.u32 %v293, 4294901760
    %v565 = vsub.f32 %v293, %v564
    %566 = vmatpush1.msra.mxu0 %v565
    %567 = vmatprep.subr.mxu0 0.0
    %v568 = vand.u32 %v294, 4294901760
    %v569 = vsub.f32 %v294, %v568
    %570 = vmatpush1.msra.mxu0 %v569
    %571 = vmatprep.subr.mxu0 0.0
    %572 = vmatpush1.msra.mxu0 0.0
    %573 = vmatprep.subr.mxu0 0.0
    %574 = vmatpush1.msra.mxu0 0.0
    %575 = vmatprep.subr.mxu0 0.0
    %576 = vmatpush1.msra.mxu0 0.0
    %577 = vmatprep.subr.mxu0 0.0
    %578 = vmatpush1.msra.mxu0 0.0
    %579 = vmatprep.subr.mxu0 0.0
    %580 = vmatpush1.msra.mxu0 0.0
    %581 = vmatprep.subr.mxu0 0.0
    %582 = vmatpush1.msra.mxu0 0.0
    %583 = vmatprep.subr.mxu0 0.0
    %584 = vmatpush1.msra.mxu0 0.0
    %585 = vmatprep.subr.mxu0 0.0
    %586 = vmatpush1.msra.mxu0 0.0
    %587 = vmatprep.subr.mxu0 0.0
    %588 = vmatpush1.msra.mxu0 0.0
    %589 = vmatprep.subr.mxu0 0.0
    %590 = vmatpush1.msra.mxu0 0.0
    %591 = vmatprep.subr.mxu0 0.0
    %592 = vmatpush1.msra.mxu0 0.0
    %593 = vmatprep.subr.mxu0 0.0
    %594 = vmatpush1.msra.mxu0 0.0
    %595 = vmatprep.subr.mxu0 0.0
    %596 = vmatpush1.msra.mxu0 0.0
    %597 = vmatprep.subr.mxu0 0.0
    %598 = vmatpush1.msra.mxu0 0.0
    %599 = vmatprep.subr.mxu0 0.0
    %600 = vmatpush1.msra.mxu0 0.0
    %601 = vmatprep.subr.mxu0 0.0
    %602 = vmatpush1.msra.mxu0 0.0
    %603 = vmatprep.subr.mxu0 0.0
    %604 = vmatpush1.msra.mxu0 0.0
    %605 = vmatprep.subr.mxu0 0.0
    %606 = vmatpush1.msra.mxu0 0.0
    %607 = vmatprep.subr.mxu0 0.0
    %608 = vmatpush1.msra.mxu0 0.0
    %609 = vmatprep.subr.mxu0 0.0
    %610 = vmatpush1.msra.mxu0 0.0
    %611 = vmatprep.subr.mxu0 0.0
    %612 = vmatpush1.msra.mxu0 0.0
    %613 = vmatprep.subr.mxu0 0.0
    %614 = vmatpush1.msra.mxu0 0.0
    %615 = vmatprep.subr.mxu0 0.0
    %616 = vmatpush1.msra.mxu0 0.0
    %617 = vmatprep.subr.mxu0 0.0
    %618 = vmatpush1.msra.mxu0 0.0
    %619 = vmatprep.subr.mxu0 0.0
    %620 = vmatpush1.msra.mxu0 0.0
    %621 = vmatprep.subr.mxu0 0.0
    %622 = vmatpush1.msra.mxu0 0.0
    %623 = vmatprep.subr.mxu0 0.0
    %624 = vmatpush1.msra.mxu0 0.0
    %625 = vmatprep.subr.mxu0 0.0
    %626 = vmatpush1.msra.mxu0 0.0
    %627 = vmatprep.mubr.f32.mxu0 0.0
    %v628 = vand.u32 %v383, 4294901760
    %v629 = vsub.f32 %v383, %v628
    %630 = vmatmul.mubr.f32.gmra.mrb[0].mxu0 %v629
    %v631 = vpop.f32.mrb[0].mxu0
    %v632 = vadd.f32 %v552, %v631
    %v633 = vpop.f32.mrb[0].mxu0
    %634 = vdwg.mxu0
    %635 = vmatprep.subr.mxu0 0.0
    %v636 = vand.u32 %v291, 4294901760
    %637 = vmatpush1.msra.mxu0 %v636
    %638 = vmatprep.subr.mxu0 0.0
    %v639 = vand.u32 %v292, 4294901760
    %640 = vmatpush1.msra.mxu0 %v639
    %641 = vmatprep.subr.mxu0 0.0
    %v642 = vand.u32 %v293, 4294901760
    %643 = vmatpush1.msra.mxu0 %v642
    %644 = vmatprep.subr.mxu0 0.0
    %v645 = vand.u32 %v294, 4294901760
    %646 = vmatpush1.msra.mxu0 %v645
    %647 = vmatprep.subr.mxu0 0.0
    %648 = vmatpush1.msra.mxu0 0.0
    %649 = vmatprep.subr.mxu0 0.0
    %650 = vmatpush1.msra.mxu0 0.0
    %651 = vmatprep.subr.mxu0 0.0
    %652 = vmatpush1.msra.mxu0 0.0
    %653 = vmatprep.subr.mxu0 0.0
    %654 = vmatpush1.msra.mxu0 0.0
    %655 = vmatprep.subr.mxu0 0.0
    %656 = vmatpush1.msra.mxu0 0.0
    %657 = vmatprep.subr.mxu0 0.0
    %658 = vmatpush1.msra.mxu0 0.0
    %659 = vmatprep.subr.mxu0 0.0
    %660 = vmatpush1.msra.mxu0 0.0
    %661 = vmatprep.subr.mxu0 0.0
    %662 = vmatpush1.msra.mxu0 0.0
    %663 = vmatprep.subr.mxu0 0.0
    %664 = vmatpush1.msra.mxu0 0.0
    %665 = vmatprep.subr.mxu0 0.0
    %666 = vmatpush1.msra.mxu0 0.0
    %667 = vmatprep.subr.mxu0 0.0
    %668 = vmatpush1.msra.mxu0 0.0
    %669 = vmatprep.subr.mxu0 0.0
    %670 = vmatpush1.msra.mxu0 0.0
    %671 = vmatprep.subr.mxu0 0.0
    %672 = vmatpush1.msra.mxu0 0.0
    %673 = vmatprep.subr.mxu0 0.0
    %674 = vmatpush1.msra.mxu0 0.0
    %675 = vmatprep.subr.mxu0 0.0
    %676 = vmatpush1.msra.mxu0 0.0
    %677 = vmatprep.subr.mxu0 0.0
    %678 = vmatpush1.msra.mxu0 0.0
    %679 = vmatprep.subr.mxu0 0.0
    %680 = vmatpush1.msra.mxu0 0.0
    %681 = vmatprep.subr.mxu0 0.0
    %682 = vmatpush1.msra.mxu0 0.0
    %683 = vmatprep.subr.mxu0 0.0
    %684 = vmatpush1.msra.mxu0 0.0
    %685 = vmatprep.subr.mxu0 0.0
    %686 = vmatpush1.msra.mxu0 0.0
    %687 = vmatprep.subr.mxu0 0.0
    %688 = vmatpush1.msra.mxu0 0.0
    %689 = vmatprep.subr.mxu0 0.0
    %690 = vmatpush1.msra.mxu0 0.0
    %691 = vmatprep.subr.mxu0 0.0
    %692 = vmatpush1.msra.mxu0 0.0
    %693 = vmatprep.subr.mxu0 0.0
    %694 = vmatpush1.msra.mxu0 0.0
    %695 = vmatprep.subr.mxu0 0.0
    %696 = vmatpush1.msra.mxu0 0.0
    %697 = vmatprep.subr.mxu0 0.0
    %698 = vmatpush1.msra.mxu0 0.0
    %699 = vmatprep.subr.mxu0 0.0
    %700 = vmatpush1.msra.mxu0 0.0
    %701 = vmatprep.subr.mxu0 0.0
    %702 = vmatpush1.msra.mxu0 0.0
    %703 = vmatprep.mubr.f32.mxu0 0.0
    %v704 = vand.u32 %v383, 4294901760
    %v705 = vsub.f32 %v383, %v704
    %v706 = vand.u32 %v705, 4294901760
    %707 = vmatmul.mubr.f32.gmra.mrb[0].mxu0 %v706
    %v708 = vpop.f32.mrb[0].mxu0
    %v709 = vadd.f32 %v632, %v708
    %v710 = vpop.f32.mrb[0].mxu0
    %711 = vdwg.mxu0
    %712 = vmatprep.subr.mxu0 0.0
    %v713 = vand.u32 %v291, 4294901760
    %v714 = vsub.f32 %v291, %v713
    %v715 = vand.u32 %v714, 4294901760
    %716 = vmatpush1.msra.mxu0 %v715
    %717 = vmatprep.subr.mxu0 0.0
    %v718 = vand.u32 %v292, 4294901760
    %v719 = vsub.f32 %v292, %v718
    %v720 = vand.u32 %v719, 4294901760
    %721 = vmatpush1.msra.mxu0 %v720
    %722 = vmatprep.subr.mxu0 0.0
    %v723 = vand.u32 %v293, 4294901760
    %v724 = vsub.f32 %v293, %v723
    %v725 = vand.u32 %v724, 4294901760
    %726 = vmatpush1.msra.mxu0 %v725
    %727 = vmatprep.subr.mxu0 0.0
    %v728 = vand.u32 %v294, 4294901760
    %v729 = vsub.f32 %v294, %v728
    %v730 = vand.u32 %v729, 4294901760
    %731 = vmatpush1.msra.mxu0 %v730
    %732 = vmatprep.subr.mxu0 0.0
    %733 = vmatpush1.msra.mxu0 0.0
    %734 = vmatprep.subr.mxu0 0.0
    %735 = vmatpush1.msra.mxu0 0.0
    %736 = vmatprep.subr.mxu0 0.0
    %737 = vmatpush1.msra.mxu0 0.0
    %738 = vmatprep.subr.mxu0 0.0
    %739 = vmatpush1.msra.mxu0 0.0
    %740 = vmatprep.subr.mxu0 0.0
    %741 = vmatpush1.msra.mxu0 0.0
    %742 = vmatprep.subr.mxu0 0.0
    %743 = vmatpush1.msra.mxu0 0.0
    %744 = vmatprep.subr.mxu0 0.0
    %745 = vmatpush1.msra.mxu0 0.0
    %746 = vmatprep.subr.mxu0 0.0
    %747 = vmatpush1.msra.mxu0 0.0
    %748 = vmatprep.subr.mxu0 0.0
    %749 = vmatpush1.msra.mxu0 0.0
    %750 = vmatprep.subr.mxu0 0.0
    %751 = vmatpush1.msra.mxu0 0.0
    %752 = vmatprep.subr.mxu0 0.0
    %753 = vmatpush1.msra.mxu0 0.0
    %754 = vmatprep.subr.mxu0 0.0
    %755 = vmatpush1.msra.mxu0 0.0
    %756 = vmatprep.subr.mxu0 0.0
    %757 = vmatpush1.msra.mxu0 0.0
    %758 = vmatprep.subr.mxu0 0.0
    %759 = vmatpush1.msra.mxu0 0.0
    %760 = vmatprep.subr.mxu0 0.0
    %761 = vmatpush1.msra.mxu0 0.0
    %762 = vmatprep.subr.mxu0 0.0
    %763 = vmatpush1.msra.mxu0 0.0
    %764 = vmatprep.subr.mxu0 0.0
    %765 = vmatpush1.msra.mxu0 0.0
    %766 = vmatprep.subr.mxu0 0.0
    %767 = vmatpush1.msra.mxu0 0.0
    %768 = vmatprep.subr.mxu0 0.0
    %769 = vmatpush1.msra.mxu0 0.0
    %770 = vmatprep.subr.mxu0 0.0
    %771 = vmatpush1.msra.mxu0 0.0
    %772 = vmatprep.subr.mxu0 0.0
    %773 = vmatpush1.msra.mxu0 0.0
    %774 = vmatprep.subr.mxu0 0.0
    %775 = vmatpush1.msra.mxu0 0.0
    %776 = vmatprep.subr.mxu0 0.0
    %777 = vmatpush1.msra.mxu0 0.0
    %778 = vmatprep.subr.mxu0 0.0
    %779 = vmatpush1.msra.mxu0 0.0
    %780 = vmatprep.subr.mxu0 0.0
    %781 = vmatpush1.msra.mxu0 0.0
    %782 = vmatprep.subr.mxu0 0.0
    %783 = vmatpush1.msra.mxu0 0.0
    %784 = vmatprep.subr.mxu0 0.0
    %785 = vmatpush1.msra.mxu0 0.0
    %786 = vmatprep.subr.mxu0 0.0
    %787 = vmatpush1.msra.mxu0 0.0
    %788 = vmatprep.mubr.f32.mxu0 0.0
    %v789 = vand.u32 %v383, 4294901760
    %790 = vmatmul.mubr.f32.gmra.mrb[0].mxu0 %v789
    %v791 = vpop.f32.mrb[0].mxu0
    %v792 = vadd.f32 %v709, %v791
    %v793 = vpop.f32.mrb[0].mxu0
    %794 = vdwg.mxu0
    %795 = vmatprep.subr.mxu0 0.0
    %v796 = vand.u32 %v291, 4294901760
    %797 = vmatpush1.msra.mxu0 %v796
    %798 = vmatprep.subr.mxu0 0.0
    %v799 = vand.u32 %v292, 4294901760
    %800 = vmatpush1.msra.mxu0 %v799
    %801 = vmatprep.subr.mxu0 0.0
    %v802 = vand.u32 %v293, 4294901760
    %803 = vmatpush1.msra.mxu0 %v802
    %804 = vmatprep.subr.mxu0 0.0
    %v805 = vand.u32 %v294, 4294901760
    %806 = vmatpush1.msra.mxu0 %v805
    %807 = vmatprep.subr.mxu0 0.0
    %808 = vmatpush1.msra.mxu0 0.0
    %809 = vmatprep.subr.mxu0 0.0
    %810 = vmatpush1.msra.mxu0 0.0
    %811 = vmatprep.subr.mxu0 0.0
    %812 = vmatpush1.msra.mxu0 0.0
    %813 = vmatprep.subr.mxu0 0.0
    %814 = vmatpush1.msra.mxu0 0.0
    %815 = vmatprep.subr.mxu0 0.0
    %816 = vmatpush1.msra.mxu0 0.0
    %817 = vmatprep.subr.mxu0 0.0
    %818 = vmatpush1.msra.mxu0 0.0
    %819 = vmatprep.subr.mxu0 0.0
    %820 = vmatpush1.msra.mxu0 0.0
    %821 = vmatprep.subr.mxu0 0.0
    %822 = vmatpush1.msra.mxu0 0.0
    %823 = vmatprep.subr.mxu0 0.0
    %824 = vmatpush1.msra.mxu0 0.0
    %825 = vmatprep.subr.mxu0 0.0
    %826 = vmatpush1.msra.mxu0 0.0
    %827 = vmatprep.subr.mxu0 0.0
    %828 = vmatpush1.msra.mxu0 0.0
    %829 = vmatprep.subr.mxu0 0.0
    %830 = vmatpush1.msra.mxu0 0.0
    %831 = vmatprep.subr.mxu0 0.0
    %832 = vmatpush1.msra.mxu0 0.0
    %833 = vmatprep.subr.mxu0 0.0
    %834 = vmatpush1.msra.mxu0 0.0
    %835 = vmatprep.subr.mxu0 0.0
    %836 = vmatpush1.msra.mxu0 0.0
    %837 = vmatprep.subr.mxu0 0.0
    %838 = vmatpush1.msra.mxu0 0.0
    %839 = vmatprep.subr.mxu0 0.0
    %840 = vmatpush1.msra.mxu0 0.0
    %841 = vmatprep.subr.mxu0 0.0
    %842 = vmatpush1.msra.mxu0 0.0
    %843 = vmatprep.subr.mxu0 0.0
    %844 = vmatpush1.msra.mxu0 0.0
    %845 = vmatprep.subr.mxu0 0.0
    %846 = vmatpush1.msra.mxu0 0.0
    %847 = vmatprep.subr.mxu0 0.0
    %848 = vmatpush1.msra.mxu0 0.0
    %849 = vmatprep.subr.mxu0 0.0
    %850 = vmatpush1.msra.mxu0 0.0
    %851 = vmatprep.subr.mxu0 0.0
    %852 = vmatpush1.msra.mxu0 0.0
    %853 = vmatprep.subr.mxu0 0.0
    %854 = vmatpush1.msra.mxu0 0.0
    %855 = vmatprep.subr.mxu0 0.0
    %856 = vmatpush1.msra.mxu0 0.0
    %857 = vmatprep.subr.mxu0 0.0
    %858 = vmatpush1.msra.mxu0 0.0
    %859 = vmatprep.subr.mxu0 0.0
    %860 = vmatpush1.msra.mxu0 0.0
    %861 = vmatprep.subr.mxu0 0.0
    %862 = vmatpush1.msra.mxu0 0.0
    %863 = vmatprep.mubr.f32.mxu0 0.0
    %v864 = vand.u32 %v383, 4294901760
    %865 = vmatmul.mubr.f32.gmra.mrb[0].mxu0 %v864
    %v866 = vpop.f32.mrb[0].mxu0
    %v867 = vadd.f32 %v792, %v866
    %v868 = vpop.f32.mrb[0].mxu0
    %869 = vdwg.mxu0
    %v870 = vmul.f32 %v867, 0.5
    %v871 = vmul.f32 %v867, 0.70710677
    %v872 = verf.f32.pop %v871
    %v873 = vadd.f32 %v872, 1.0
    %v874 = vmul.f32 %v870, %v873
    %v875 = vld [vmem:[%s5] sm:$0xf]
    %v876 = vld [vmem:[%s6] sm:$0x1]
    %v878 = vlaneseq
    %v879 = vshrl.u32 %v878, 7
    %v880 = vsub.s32 0, %v879
    %v881 = vrot.slane %v876, %v880
    %vm883 = vcmask 31744
    %v885 = vsel %vm883, %v874, 0
    %vm887 = vcmask 1043456
    %v889 = vsel %vm887, %v875, 0
    %891 = vmatprep.subr.mxu0 0.0
    %v892 = vand.u32 %v889, 4294901760
    %893 = vmatpush1.msra.mxu0 %v892
    %894 = vmatprep.subr.mxu0 0.0
    %895 = vmatpush1.msra.mxu0 0.0
    %896 = vmatprep.subr.mxu0 0.0
    %897 = vmatpush1.msra.mxu0 0.0
    %898 = vmatprep.subr.mxu0 0.0
    %899 = vmatpush1.msra.mxu0 0.0
    %900 = vmatprep.subr.mxu0 0.0
    %901 = vmatpush1.msra.mxu0 0.0
    %902 = vmatprep.subr.mxu0 0.0
    %903 = vmatpush1.msra.mxu0 0.0
    %904 = vmatprep.subr.mxu0 0.0
    %905 = vmatpush1.msra.mxu0 0.0
    %906 = vmatprep.subr.mxu0 0.0
    %907 = vmatpush1.msra.mxu0 0.0
    %908 = vmatprep.subr.mxu0 0.0
    %909 = vmatpush1.msra.mxu0 0.0
    %910 = vmatprep.subr.mxu0 0.0
    %911 = vmatpush1.msra.mxu0 0.0
    %912 = vmatprep.subr.mxu0 0.0
    %913 = vmatpush1.msra.mxu0 0.0
    %914 = vmatprep.subr.mxu0 0.0
    %915 = vmatpush1.msra.mxu0 0.0
    %916 = vmatprep.subr.mxu0 0.0
    %917 = vmatpush1.msra.mxu0 0.0
    %918 = vmatprep.subr.mxu0 0.0
    %919 = vmatpush1.msra.mxu0 0.0
    %920 = vmatprep.subr.mxu0 0.0
    %921 = vmatpush1.msra.mxu0 0.0
    %922 = vmatprep.subr.mxu0 0.0
    %923 = vmatpush1.msra.mxu0 0.0
    %924 = vmatprep.subr.mxu0 0.0
    %925 = vmatpush1.msra.mxu0 0.0
    %926 = vmatprep.subr.mxu0 0.0
    %927 = vmatpush1.msra.mxu0 0.0
    %928 = vmatprep.subr.mxu0 0.0
    %929 = vmatpush1.msra.mxu0 0.0
    %930 = vmatprep.subr.mxu0 0.0
    %931 = vmatpush1.msra.mxu0 0.0
    %932 = vmatprep.subr.mxu0 0.0
    %933 = vmatpush1.msra.mxu0 0.0
    %934 = vmatprep.subr.mxu0 0.0
    %935 = vmatpush1.msra.mxu0 0.0
    %936 = vmatprep.subr.mxu0 0.0
    %937 = vmatpush1.msra.mxu0 0.0
    %938 = vmatprep.subr.mxu0 0.0
    %939 = vmatpush1.msra.mxu0 0.0
    %940 = vmatprep.subr.mxu0 0.0
    %941 = vmatpush1.msra.mxu0 0.0
    %942 = vmatprep.subr.mxu0 0.0
    %943 = vmatpush1.msra.mxu0 0.0
    %944 = vmatprep.subr.mxu0 0.0
    %945 = vmatpush1.msra.mxu0 0.0
    %946 = vmatprep.subr.mxu0 0.0
    %947 = vmatpush1.msra.mxu0 0.0
    %948 = vmatprep.subr.mxu0 0.0
    %949 = vmatpush1.msra.mxu0 0.0
    %950 = vmatprep.subr.mxu0 0.0
    %951 = vmatpush1.msra.mxu0 0.0
    %952 = vmatprep.subr.mxu0 0.0
    %953 = vmatpush1.msra.mxu0 0.0
    %954 = vmatprep.subr.mxu0 0.0
    %955 = vmatpush1.msra.mxu0 0.0
    %956 = vmatprep.mubr.f32.mxu0 0.0
    %v957 = vand.u32 %v885, 4294901760
    %v958 = vsub.f32 %v885, %v957
    %v959 = vand.u32 %v958, 4294901760
    %v960 = vsub.f32 %v958, %v959
    %v961 = vand.u32 %v960, 4294901760
    %962 = vmatmul.mubr.f32.gmra.mrb[0].mxu0 %v961
    %v963 = vpop.f32.mrb[0].mxu0
    %v964 = vadd.f32 %v881, %v963
    %v965 = vpop.f32.mrb[0].mxu0
    %966 = vdwg.mxu0
    %967 = vmatprep.subr.mxu0 0.0
    %v968 = vand.u32 %v889, 4294901760
    %v969 = vsub.f32 %v889, %v968
    %v970 = vand.u32 %v969, 4294901760
    %v971 = vsub.f32 %v969, %v970
    %v972 = vand.u32 %v971, 4294901760
    %973 = vmatpush1.msra.mxu0 %v972
    %974 = vmatprep.subr.mxu0 0.0
    %975 = vmatpush1.msra.mxu0 0.0
    %976 = vmatprep.subr.mxu0 0.0
    %977 = vmatpush1.msra.mxu0 0.0
    %978 = vmatprep.subr.mxu0 0.0
    %979 = vmatpush1.msra.mxu0 0.0
    %980 = vmatprep.subr.mxu0 0.0
    %981 = vmatpush1.msra.mxu0 0.0
    %982 = vmatprep.subr.mxu0 0.0
    %983 = vmatpush1.msra.mxu0 0.0
    %984 = vmatprep.subr.mxu0 0.0
    %985 = vmatpush1.msra.mxu0 0.0
    %986 = vmatprep.subr.mxu0 0.0
    %987 = vmatpush1.msra.mxu0 0.0
    %988 = vmatprep.subr.mxu0 0.0
    %989 = vmatpush1.msra.mxu0 0.0
    %990 = vmatprep.subr.mxu0 0.0
    %991 = vmatpush1.msra.mxu0 0.0
    %992 = vmatprep.subr.mxu0 0.0
    %993 = vmatpush1.msra.mxu0 0.0
    %994 = vmatprep.subr.mxu0 0.0
    %995 = vmatpush1.msra.mxu0 0.0
    %996 = vmatprep.subr.mxu0 0.0
    %997 = vmatpush1.msra.mxu0 0.0
    %998 = vmatprep.subr.mxu0 0.0
    %999 = vmatpush1.msra.mxu0 0.0
    %1000 = vmatprep.subr.mxu0 0.0
    %1001 = vmatpush1.msra.mxu0 0.0
    %1002 = vmatprep.subr.mxu0 0.0
    %1003 = vmatpush1.msra.mxu0 0.0
    %1004 = vmatprep.subr.mxu0 0.0
    %1005 = vmatpush1.msra.mxu0 0.0
    %1006 = vmatprep.subr.mxu0 0.0
    %1007 = vmatpush1.msra.mxu0 0.0
    %1008 = vmatprep.subr.mxu0 0.0
    %1009 = vmatpush1.msra.mxu0 0.0
    %1010 = vmatprep.subr.mxu0 0.0
    %1011 = vmatpush1.msra.mxu0 0.0
    %1012 = vmatprep.subr.mxu0 0.0
    %1013 = vmatpush1.msra.mxu0 0.0
    %1014 = vmatprep.subr.mxu0 0.0
    %1015 = vmatpush1.msra.mxu0 0.0
    %1016 = vmatprep.subr.mxu0 0.0
    %1017 = vmatpush1.msra.mxu0 0.0
    %1018 = vmatprep.subr.mxu0 0.0
    %1019 = vmatpush1.msra.mxu0 0.0
    %1020 = vmatprep.subr.mxu0 0.0
    %1021 = vmatpush1.msra.mxu0 0.0
    %1022 = vmatprep.subr.mxu0 0.0
    %1023 = vmatpush1.msra.mxu0 0.0
    %1024 = vmatprep.subr.mxu0 0.0
    %1025 = vmatpush1.msra.mxu0 0.0
    %1026 = vmatprep.subr.mxu0 0.0
    %1027 = vmatpush1.msra.mxu0 0.0
    %1028 = vmatprep.subr.mxu0 0.0
    %1029 = vmatpush1.msra.mxu0 0.0
    %1030 = vmatprep.subr.mxu0 0.0
    %1031 = vmatpush1.msra.mxu0 0.0
    %1032 = vmatprep.subr.mxu0 0.0
    %1033 = vmatpush1.msra.mxu0 0.0
    %1034 = vmatprep.subr.mxu0 0.0
    %1035 = vmatpush1.msra.mxu0 0.0
    %1036 = vmatprep.mubr.f32.mxu0 0.0
    %v1037 = vand.u32 %v885, 4294901760
    %1038 = vmatmul.mubr.f32.gmra.mrb[0].mxu0 %v1037
    %v1039 = vpop.f32.mrb[0].mxu0
    %v1040 = vadd.f32 %v964, %v1039
    %v1041 = vpop.f32.mrb[0].mxu0
    %1042 = vdwg.mxu0
    %1043 = vmatprep.subr.mxu0 0.0
    %v1044 = vand.u32 %v889, 4294901760
    %v1045 = vsub.f32 %v889, %v1044
    %1046 = vmatpush1.msra.mxu0 %v1045
    %1047 = vmatprep.subr.mxu0 0.0
    %1048 = vmatpush1.msra.mxu0 0.0
    %1049 = vmatprep.subr.mxu0 0.0
    %1050 = vmatpush1.msra.mxu0 0.0
    %1051 = vmatprep.subr.mxu0 0.0
    %1052 = vmatpush1.msra.mxu0 0.0
    %1053 = vmatprep.subr.mxu0 0.0
    %1054 = vmatpush1.msra.mxu0 0.0
    %1055 = vmatprep.subr.mxu0 0.0
    %1056 = vmatpush1.msra.mxu0 0.0
    %1057 = vmatprep.subr.mxu0 0.0
    %1058 = vmatpush1.msra.mxu0 0.0
    %1059 = vmatprep.subr.mxu0 0.0
    %1060 = vmatpush1.msra.mxu0 0.0
    %1061 = vmatprep.subr.mxu0 0.0
    %1062 = vmatpush1.msra.mxu0 0.0
    %1063 = vmatprep.subr.mxu0 0.0
    %1064 = vmatpush1.msra.mxu0 0.0
    %1065 = vmatprep.subr.mxu0 0.0
    %1066 = vmatpush1.msra.mxu0 0.0
    %1067 = vmatprep.subr.mxu0 0.0
    %1068 = vmatpush1.msra.mxu0 0.0
    %1069 = vmatprep.subr.mxu0 0.0
    %1070 = vmatpush1.msra.mxu0 0.0
    %1071 = vmatprep.subr.mxu0 0.0
    %1072 = vmatpush1.msra.mxu0 0.0
    %1073 = vmatprep.subr.mxu0 0.0
    %1074 = vmatpush1.msra.mxu0 0.0
    %1075 = vmatprep.subr.mxu0 0.0
    %1076 = vmatpush1.msra.mxu0 0.0
    %1077 = vmatprep.subr.mxu0 0.0
    %1078 = vmatpush1.msra.mxu0 0.0
    %1079 = vmatprep.subr.mxu0 0.0
    %1080 = vmatpush1.msra.mxu0 0.0
    %1081 = vmatprep.subr.mxu0 0.0
    %1082 = vmatpush1.msra.mxu0 0.0
    %1083 = vmatprep.subr.mxu0 0.0
    %1084 = vmatpush1.msra.mxu0 0.0
    %1085 = vmatprep.subr.mxu0 0.0
    %1086 = vmatpush1.msra.mxu0 0.0
    %1087 = vmatprep.subr.mxu0 0.0
    %1088 = vmatpush1.msra.mxu0 0.0
    %1089 = vmatprep.subr.mxu0 0.0
    %1090 = vmatpush1.msra.mxu0 0.0
    %1091 = vmatprep.subr.mxu0 0.0
    %1092 = vmatpush1.msra.mxu0 0.0
    %1093 = vmatprep.subr.mxu0 0.0
    %1094 = vmatpush1.msra.mxu0 0.0
    %1095 = vmatprep.subr.mxu0 0.0
    %1096 = vmatpush1.msra.mxu0 0.0
    %1097 = vmatprep.subr.mxu0 0.0
    %1098 = vmatpush1.msra.mxu0 0.0
    %1099 = vmatprep.subr.mxu0 0.0
    %1100 = vmatpush1.msra.mxu0 0.0
    %1101 = vmatprep.subr.mxu0 0.0
    %1102 = vmatpush1.msra.mxu0 0.0
    %1103 = vmatprep.subr.mxu0 0.0
    %1104 = vmatpush1.msra.mxu0 0.0
    %1105 = vmatprep.subr.mxu0 0.0
    %1106 = vmatpush1.msra.mxu0 0.0
    %1107 = vmatprep.subr.mxu0 0.0
    %1108 = vmatpush1.msra.mxu0 0.0
    %1109 = vmatprep.mubr.f32.mxu0 0.0
    %v1110 = vand.u32 %v885, 4294901760
    %v1111 = vsub.f32 %v885, %v1110
    %1112 = vmatmul.mubr.f32.gmra.mrb[0].mxu0 %v1111
    %v1113 = vpop.f32.mrb[0].mxu0
    %v1114 = vadd.f32 %v1040, %v1113
    %v1115 = vpop.f32.mrb[0].mxu0
    %1116 = vdwg.mxu0
    %1117 = vmatprep.subr.mxu0 0.0
    %v1118 = vand.u32 %v889, 4294901760
    %1119 = vmatpush1.msra.mxu0 %v1118
    %1120 = vmatprep.subr.mxu0 0.0
    %1121 = vmatpush1.msra.mxu0 0.0
    %1122 = vmatprep.subr.mxu0 0.0
    %1123 = vmatpush1.msra.mxu0 0.0
    %1124 = vmatprep.subr.mxu0 0.0
    %1125 = vmatpush1.msra.mxu0 0.0
    %1126 = vmatprep.subr.mxu0 0.0
    %1127 = vmatpush1.msra.mxu0 0.0
    %1128 = vmatprep.subr.mxu0 0.0
    %1129 = vmatpush1.msra.mxu0 0.0
    %1130 = vmatprep.subr.mxu0 0.0
    %1131 = vmatpush1.msra.mxu0 0.0
    %1132 = vmatprep.subr.mxu0 0.0
    %1133 = vmatpush1.msra.mxu0 0.0
    %1134 = vmatprep.subr.mxu0 0.0
    %1135 = vmatpush1.msra.mxu0 0.0
    %1136 = vmatprep.subr.mxu0 0.0
    %1137 = vmatpush1.msra.mxu0 0.0
    %1138 = vmatprep.subr.mxu0 0.0
    %1139 = vmatpush1.msra.mxu0 0.0
    %1140 = vmatprep.subr.mxu0 0.0
    %1141 = vmatpush1.msra.mxu0 0.0
    %1142 = vmatprep.subr.mxu0 0.0
    %1143 = vmatpush1.msra.mxu0 0.0
    %1144 = vmatprep.subr.mxu0 0.0
    %1145 = vmatpush1.msra.mxu0 0.0
    %1146 = vmatprep.subr.mxu0 0.0
    %1147 = vmatpush1.msra.mxu0 0.0
    %1148 = vmatprep.subr.mxu0 0.0
    %1149 = vmatpush1.msra.mxu0 0.0
    %1150 = vmatprep.subr.mxu0 0.0
    %1151 = vmatpush1.msra.mxu0 0.0
    %1152 = vmatprep.subr.mxu0 0.0
    %1153 = vmatpush1.msra.mxu0 0.0
    %1154 = vmatprep.subr.mxu0 0.0
    %1155 = vmatpush1.msra.mxu0 0.0
    %1156 = vmatprep.subr.mxu0 0.0
    %1157 = vmatpush1.msra.mxu0 0.0
    %1158 = vmatprep.subr.mxu0 0.0
    %1159 = vmatpush1.msra.mxu0 0.0
    %1160 = vmatprep.subr.mxu0 0.0
    %1161 = vmatpush1.msra.mxu0 0.0
    %1162 = vmatprep.subr.mxu0 0.0
    %1163 = vmatpush1.msra.mxu0 0.0
    %1164 = vmatprep.subr.mxu0 0.0
    %1165 = vmatpush1.msra.mxu0 0.0
    %1166 = vmatprep.subr.mxu0 0.0
    %1167 = vmatpush1.msra.mxu0 0.0
    %1168 = vmatprep.subr.mxu0 0.0
    %1169 = vmatpush1.msra.mxu0 0.0
    %1170 = vmatprep.subr.mxu0 0.0
    %1171 = vmatpush1.msra.mxu0 0.0
    %1172 = vmatprep.subr.mxu0 0.0
    %1173 = vmatpush1.msra.mxu0 0.0
    %1174 = vmatprep.subr.mxu0 0.0
    %1175 = vmatpush1.msra.mxu0 0.0
    %1176 = vmatprep.subr.mxu0 0.0
    %1177 = vmatpush1.msra.mxu0 0.0
    %1178 = vmatprep.subr.mxu0 0.0
    %1179 = vmatpush1.msra.mxu0 0.0
    %1180 = vmatprep.subr.mxu0 0.0
    %1181 = vmatpush1.msra.mxu0 0.0
    %1182 = vmatprep.mubr.f32.mxu0 0.0
    %v1183 = vand.u32 %v885, 4294901760
    %v1184 = vsub.f32 %v885, %v1183
    %v1185 = vand.u32 %v1184, 4294901760
    %1186 = vmatmul.mubr.f32.gmra.mrb[0].mxu0 %v1185
    %v1187 = vpop.f32.mrb[0].mxu0
    %v1188 = vadd.f32 %v1114, %v1187
    %v1189 = vpop.f32.mrb[0].mxu0
    %1190 = vdwg.mxu0
    %1191 = vmatprep.subr.mxu0 0.0
    %v1192 = vand.u32 %v889, 4294901760
    %v1193 = vsub.f32 %v889, %v1192
    %v1194 = vand.u32 %v1193, 4294901760
    %1195 = vmatpush1.msra.mxu0 %v1194
    %1196 = vmatprep.subr.mxu0 0.0
    %1197 = vmatpush1.msra.mxu0 0.0
    %1198 = vmatprep.subr.mxu0 0.0
    %1199 = vmatpush1.msra.mxu0 0.0
    %1200 = vmatprep.subr.mxu0 0.0
    %1201 = vmatpush1.msra.mxu0 0.0
    %1202 = vmatprep.subr.mxu0 0.0
    %1203 = vmatpush1.msra.mxu0 0.0
    %1204 = vmatprep.subr.mxu0 0.0
    %1205 = vmatpush1.msra.mxu0 0.0
    %1206 = vmatprep.subr.mxu0 0.0
    %1207 = vmatpush1.msra.mxu0 0.0
    %1208 = vmatprep.subr.mxu0 0.0
    %1209 = vmatpush1.msra.mxu0 0.0
    %1210 = vmatprep.subr.mxu0 0.0
    %1211 = vmatpush1.msra.mxu0 0.0
    %1212 = vmatprep.subr.mxu0 0.0
    %1213 = vmatpush1.msra.mxu0 0.0
    %1214 = vmatprep.subr.mxu0 0.0
    %1215 = vmatpush1.msra.mxu0 0.0
    %1216 = vmatprep.subr.mxu0 0.0
    %1217 = vmatpush1.msra.mxu0 0.0
    %1218 = vmatprep.subr.mxu0 0.0
    %1219 = vmatpush1.msra.mxu0 0.0
    %1220 = vmatprep.subr.mxu0 0.0
    %1221 = vmatpush1.msra.mxu0 0.0
    %1222 = vmatprep.subr.mxu0 0.0
    %1223 = vmatpush1.msra.mxu0 0.0
    %1224 = vmatprep.subr.mxu0 0.0
    %1225 = vmatpush1.msra.mxu0 0.0
    %1226 = vmatprep.subr.mxu0 0.0
    %1227 = vmatpush1.msra.mxu0 0.0
    %1228 = vmatprep.subr.mxu0 0.0
    %1229 = vmatpush1.msra.mxu0 0.0
    %1230 = vmatprep.subr.mxu0 0.0
    %1231 = vmatpush1.msra.mxu0 0.0
    %1232 = vmatprep.subr.mxu0 0.0
    %1233 = vmatpush1.msra.mxu0 0.0
    %1234 = vmatprep.subr.mxu0 0.0
    %1235 = vmatpush1.msra.mxu0 0.0
    %1236 = vmatprep.subr.mxu0 0.0
    %1237 = vmatpush1.msra.mxu0 0.0
    %1238 = vmatprep.subr.mxu0 0.0
    %1239 = vmatpush1.msra.mxu0 0.0
    %1240 = vmatprep.subr.mxu0 0.0
    %1241 = vmatpush1.msra.mxu0 0.0
    %1242 = vmatprep.subr.mxu0 0.0
    %1243 = vmatpush1.msra.mxu0 0.0
    %1244 = vmatprep.subr.mxu0 0.0
    %1245 = vmatpush1.msra.mxu0 0.0
    %1246 = vmatprep.subr.mxu0 0.0
    %1247 = vmatpush1.msra.mxu0 0.0
    %1248 = vmatprep.subr.mxu0 0.0
    %1249 = vmatpush1.msra.mxu0 0.0
    %1250 = vmatprep.subr.mxu0 0.0
    %1251 = vmatpush1.msra.mxu0 0.0
    %1252 = vmatprep.subr.mxu0 0.0
    %1253 = vmatpush1.msra.mxu0 0.0
    %1254 = vmatprep.subr.mxu0 0.0
    %1255 = vmatpush1.msra.mxu0 0.0
    %1256 = vmatprep.subr.mxu0 0.0
    %1257 = vmatpush1.msra.mxu0 0.0
    %1258 = vmatprep.mubr.f32.mxu0 0.0
    %v1259 = vand.u32 %v885, 4294901760
    %1260 = vmatmul.mubr.f32.gmra.mrb[0].mxu0 %v1259
    %v1261 = vpop.f32.mrb[0].mxu0
    %v1262 = vadd.f32 %v1188, %v1261
    %v1263 = vpop.f32.mrb[0].mxu0
    %1264 = vdwg.mxu0
    %1265 = vmatprep.subr.mxu0 0.0
    %v1266 = vand.u32 %v889, 4294901760
    %1267 = vmatpush1.msra.mxu0 %v1266
    %1268 = vmatprep.subr.mxu0 0.0
    %1269 = vmatpush1.msra.mxu0 0.0
    %1270 = vmatprep.subr.mxu0 0.0
    %1271 = vmatpush1.msra.mxu0 0.0
    %1272 = vmatprep.subr.mxu0 0.0
    %1273 = vmatpush1.msra.mxu0 0.0
    %1274 = vmatprep.subr.mxu0 0.0
    %1275 = vmatpush1.msra.mxu0 0.0
    %1276 = vmatprep.subr.mxu0 0.0
    %1277 = vmatpush1.msra.mxu0 0.0
    %1278 = vmatprep.subr.mxu0 0.0
    %1279 = vmatpush1.msra.mxu0 0.0
    %1280 = vmatprep.subr.mxu0 0.0
    %1281 = vmatpush1.msra.mxu0 0.0
    %1282 = vmatprep.subr.mxu0 0.0
    %1283 = vmatpush1.msra.mxu0 0.0
    %1284 = vmatprep.subr.mxu0 0.0
    %1285 = vmatpush1.msra.mxu0 0.0
    %1286 = vmatprep.subr.mxu0 0.0
    %1287 = vmatpush1.msra.mxu0 0.0
    %1288 = vmatprep.subr.mxu0 0.0
    %1289 = vmatpush1.msra.mxu0 0.0
    %1290 = vmatprep.subr.mxu0 0.0
    %1291 = vmatpush1.msra.mxu0 0.0
    %1292 = vmatprep.subr.mxu0 0.0
    %1293 = vmatpush1.msra.mxu0 0.0
    %1294 = vmatprep.subr.mxu0 0.0
    %1295 = vmatpush1.msra.mxu0 0.0
    %1296 = vmatprep.subr.mxu0 0.0
    %1297 = vmatpush1.msra.mxu0 0.0
    %1298 = vmatprep.subr.mxu0 0.0
    %1299 = vmatpush1.msra.mxu0 0.0
    %1300 = vmatprep.subr.mxu0 0.0
    %1301 = vmatpush1.msra.mxu0 0.0
    %1302 = vmatprep.subr.mxu0 0.0
    %1303 = vmatpush1.msra.mxu0 0.0
    %1304 = vmatprep.subr.mxu0 0.0
    %1305 = vmatpush1.msra.mxu0 0.0
    %1306 = vmatprep.subr.mxu0 0.0
    %1307 = vmatpush1.msra.mxu0 0.0
    %1308 = vmatprep.subr.mxu0 0.0
    %1309 = vmatpush1.msra.mxu0 0.0
    %1310 = vmatprep.subr.mxu0 0.0
    %1311 = vmatpush1.msra.mxu0 0.0
    %1312 = vmatprep.subr.mxu0 0.0
    %1313 = vmatpush1.msra.mxu0 0.0
    %1314 = vmatprep.subr.mxu0 0.0
    %1315 = vmatpush1.msra.mxu0 0.0
    %1316 = vmatprep.subr.mxu0 0.0
    %1317 = vmatpush1.msra.mxu0 0.0
    %1318 = vmatprep.subr.mxu0 0.0
    %1319 = vmatpush1.msra.mxu0 0.0
    %1320 = vmatprep.subr.mxu0 0.0
    %1321 = vmatpush1.msra.mxu0 0.0
    %1322 = vmatprep.subr.mxu0 0.0
    %1323 = vmatpush1.msra.mxu0 0.0
    %1324 = vmatprep.subr.mxu0 0.0
    %1325 = vmatpush1.msra.mxu0 0.0
    %1326 = vmatprep.subr.mxu0 0.0
    %1327 = vmatpush1.msra.mxu0 0.0
    %1328 = vmatprep.subr.mxu0 0.0
    %1329 = vmatpush1.msra.mxu0 0.0
    %1330 = vmatprep.mubr.f32.mxu0 0.0
    %v1331 = vand.u32 %v885, 4294901760
    %1332 = vmatmul.mubr.f32.gmra.mrb[0].mxu0 %v1331
    %v1333 = vpop.f32.mrb[0].mxu0
    %v1334 = vadd.f32 %v1262, %v1333
    %v1335 = vpop.f32.mrb[0].mxu0
    %1336 = vdwg.mxu0
    %v1337 = vxor.u32 %v1334, 2147483648
    %v1338 = vmul.f32 %v1337, 1.442695
    %v1339 = vpow.pop %v1338
    %v1340 = vadd.f32 %v1339, 1.0
    %v1341 = vrcp.pop %v1340
    %v1342 = vmul.f32 1.0, %v1341
    %v1343 = vlaneseq
    %v1344 = vshrl.u32 %v1343, 7
    %v1345 = vsub.s32 0, %v1344
    %v1346 = vrot.slane %v1342, %v1345
    %1348 = vbcast.lane.b32.xlu0 %v1346, 256
    %v1349 = vpop.permute.xlu0 %1348
    %s1351 = sor.u32 256, 8
    %1352 = vbcast.lane.b32.xlu0 %v1346, %s1351
    %v1353 = vpop.permute.xlu0 %1352
    %s1355 = sor.u32 256, 16
    %1356 = vbcast.lane.b32.xlu0 %v1346, %s1355
    %v1357 = vpop.permute.xlu0 %1356
    %s1359 = sor.u32 256, 24
    %1360 = vbcast.lane.b32.xlu0 %v1346, %s1359
    %v1361 = vpop.permute.xlu0 %1360
    %v1362 = vlaneseq
    %v1363 = vshrl.u32 %v1362, 7
    %v1364 = vsub.s32 1, %v1363
    %v1365 = vrot.slane %v1342, %v1364
    %1367 = vbcast.lane.b32.xlu0 %v1365, 256
    %v1368 = vpop.permute.xlu0 %1367
    %s1370 = sor.u32 256, 8
    %1371 = vbcast.lane.b32.xlu0 %v1365, %s1370
    %v1372 = vpop.permute.xlu0 %1371
    %s1374 = sor.u32 256, 16
    %1375 = vbcast.lane.b32.xlu0 %v1365, %s1374
    %v1376 = vpop.permute.xlu0 %1375
    %s1378 = sor.u32 256, 24
    %1379 = vbcast.lane.b32.xlu0 %v1365, %s1378
    %v1380 = vpop.permute.xlu0 %1379
    %v1381 = vmul.f32 %v41, %v1349
    %v1382 = vmul.f32 %v42, %v1349
    %v1383 = vmul.f32 %v43, %v1353
    %v1384 = vmul.f32 %v44, %v1353
    %v1385 = vmul.f32 %v45, %v1357
    %v1386 = vmul.f32 %v46, %v1357
    %v1387 = vmul.f32 %v47, %v1361
    %v1388 = vmul.f32 %v48, %v1361
    %v1389 = vmul.f32 %v49, %v1368
    %v1390 = vmul.f32 %v50, %v1368
    %v1391 = vmul.f32 %v51, %v1372
    %v1392 = vmul.f32 %v52, %v1372
    %v1393 = vmul.f32 %v53, %v1376
    %v1394 = vmul.f32 %v54, %v1376
    %v1395 = vmul.f32 %v55, %v1380
    %v1396 = vmul.f32 %v56, %v1380
    %1397 = vst [vmem:[#allocation5] sm:$0xff] %v1381
    %1398 = vst [vmem:[#allocation5 + $0x8] sm:$0xff] %v1382
    %1399 = vst [vmem:[#allocation5 + $0x10] sm:$0xff] %v1383
    %1400 = vst [vmem:[#allocation5 + $0x18] sm:$0xff] %v1384
    %1401 = vst [vmem:[#allocation5 + $0x20] sm:$0xff] %v1385
    %1402 = vst [vmem:[#allocation5 + $0x28] sm:$0xff] %v1386
    %1403 = vst [vmem:[#allocation5 + $0x30] sm:$0xff] %v1387
    %1404 = vst [vmem:[#allocation5 + $0x38] sm:$0xff] %v1388
    %1405 = vst [vmem:[#allocation5 + $0x40] sm:$0xff] %v1389
    %1406 = vst [vmem:[#allocation5 + $0x48] sm:$0xff] %v1390
    %1407 = vst [vmem:[#allocation5 + $0x50] sm:$0xff] %v1391
    %1408 = vst [vmem:[#allocation5 + $0x58] sm:$0xff] %v1392
    %1409 = vst [vmem:[#allocation5 + $0x60] sm:$0xff] %v1393
    %1410 = vst [vmem:[#allocation5 + $0x68] sm:$0xff] %v1394
    %1411 = vst [vmem:[#allocation5 + $0x70] sm:$0xff] %v1395
    %1412 = vst [vmem:[#allocation5 + $0x78] sm:$0xff] %v1396
    // Predicated region
    $region34: #{tpu_custom_call.1} parent=1 // pred_check
      _
    $region35: #{tpu_custom_call.1} parent=1 // pred_check_branch
      %1414 = sbr.rel (0) target = $region37
    $region36: #{tpu_custom_call.1} parent=1 // pred_region
      %s1416 = ssub.s32 2048, 2048
      %1417 = vsyncadd [#allocation4], %s1416
      %s1418 = sshll.u32 [#allocation5], 4
      %s1419 = int_to_ptr.vmem [resolvable:$true] %s1418
      %1424 = dma.vmem_to_hbm [thread:$0]  %s1419, 2048, %s7, [#allocation4], 256, 256, 16
    $region37: #{tpu_custom_call.1} parent=1 // pred_fallthru
      _
    // Predicated region
    $region38: #{tpu_custom_call.1} parent=1 // pred_check
      _
    $region39: #{tpu_custom_call.1} parent=1 // pred_check_branch
      %1426 = sbr.rel (0) target = $region41
    $region40: #{tpu_custom_call.1} parent=1 // pred_region
      %1427 = dma.done [#allocation4], 2048
    $region41: #{tpu_custom_call.1} parent=1 // pred_fallthru
      _
    %1428 = vsyncpa [#allocation3], 1
    %1429 = vsyncpa [#allocation4], 1

</llo_original>
